<compile_context>
chip_gen: v7x
topology: tpu7x:2x2x1
jax: 0.10.0
libtpu: 0.0.40
codegen_flags: <defaults>
</compile_context>

<pallas_src>
import numpy as np
import jax
import jax.numpy as jnp
from jax.experimental import pallas as pl
from jax.experimental.pallas import tpu as pltpu


# ----------------------------------------------------------------------------
# DFT matrices (real/imag split, 'ortho' normalization baked in) -- numpy, host side
# ----------------------------------------------------------------------------
def _dft_matrices(H, W):
    K = W // 2 + 1
    sW = 1.0 / np.sqrt(W)
    sH = 1.0 / np.sqrt(H)

    # rfft along W:  X[k] = (1/sqrt(W)) * sum_n x[n] e^{-2*pi*i*n*k/W}
    n = np.arange(W)[:, None]
    k = np.arange(K)[None, :]
    ang_w = 2.0 * np.pi * n * k / W
    Cr = (np.cos(ang_w) * sW).astype(np.float32)           # (W, K)
    Ci = (-np.sin(ang_w) * sW).astype(np.float32)          # (W, K)

    # full FFT along H (forward); inverse is its conjugate: Gr = Fr, Gi = -Fi
    h = np.arange(H)
    ang_h = 2.0 * np.pi * np.outer(h, h) / H
    Fr = (np.cos(ang_h) * sH).astype(np.float32)           # (H, H)
    Fi = (-np.sin(ang_h) * sH).astype(np.float32)          # (H, H)

    # irfft along W (Hermitian extension; 2x weight for non-DC/non-Nyquist bins;
    # imag of DC/Nyquist drops out since sin(0) = sin(pi*n) = 0, matching torch/np)
    wk = np.ones(K)
    if W % 2 == 0:
        wk[1:-1] = 2.0
    else:
        wk[1:] = 2.0
    kk = np.arange(K)[:, None]
    nn = np.arange(W)[None, :]
    ang_b = 2.0 * np.pi * kk * nn / W
    Br = (wk[:, None] * np.cos(ang_b) * sW).astype(np.float32)    # (K, W)
    Bi = (-(wk[:, None]) * np.sin(ang_b) * sW).astype(np.float32)  # (K, W)

    return Cr, Ci, Fr, Fi, Br, Bi


def _choose_tc(B, C, K):
    """Channels per grid step: aim for TC*B*K >= 128 spectral lanes, but keep
    >= 2 grid steps when C allows so both v7x TensorCores get work."""
    target = max(1, -(-128 // max(B * K, 1)))     # ceil(128 / (B*K))
    tc = max(1, min(C, target))
    while C % tc:
        tc -= 1
    if tc == C and C > 1:
        tc = max(1, C // 2)
        while C % tc:
            tc -= 1
    return tc


# ----------------------------------------------------------------------------
# Pallas kernel: one block of TP = TC*B planes per grid step, all 2-D matmuls
# ----------------------------------------------------------------------------
def _block_fft_kernel(x_ref, wr_ref, wi_ref, cbr_ref, cbi_ref,
                      fr_ref, fi_ref, fs_ref, fd_ref,
                      bbr_ref, bbi_ref, o_ref):
    x = x_ref[0]                                            # (H, TP*W) real

    # rfft along W for all TP planes at once (block-diagonal ortho DFT operator)
    xr = jnp.dot(x, cbr_ref[...], preferred_element_type=jnp.float32)   # (H, TP*K)
    xi = jnp.dot(x, cbi_ref[...], preferred_element_type=jnp.float32)

    # forward FFT along H: F = Fr + i*Fi, Gauss 3-mult complex product
    m1 = jnp.dot(fr_ref[...], xr, preferred_element_type=jnp.float32)
    m2 = jnp.dot(fi_ref[...], xi, preferred_element_type=jnp.float32)
    m3 = jnp.dot(fs_ref[...], xr + xi, preferred_element_type=jnp.float32)
    yr = m1 - m2
    yi = m3 - m1 - m2

    # learned complex weight (per channel & frequency, pre-broadcast over batch)
    wr = wr_ref[0]                                          # (H, TP*K)
    wi = wi_ref[0]
    zr = yr * wr - yi * wi
    zi = yr * wi + yi * wr

    # inverse FFT along H: G = conj(F) = Fr - i*Fi, Gauss 3-mult with Fd = Fr - Fi
    n1 = jnp.dot(fr_ref[...], zr, preferred_element_type=jnp.float32)
    n2 = jnp.dot(fi_ref[...], zi, preferred_element_type=jnp.float32)
    n3 = jnp.dot(fd_ref[...], zr + zi, preferred_element_type=jnp.float32)
    ur = n1 + n2                 # Gr@Zr - Gi@Zi  (Gr=Fr, Gi=-Fi)
    ui = n3 - n1 + n2            # Gr@Zi + Gi@Zr

    # irfft along W for all planes (block-diagonal operator, Hermitian wk baked in)
    out = (jnp.dot(ur, bbr_ref[...], preferred_element_type=jnp.float32)
           + jnp.dot(ui, bbi_ref[...], preferred_element_type=jnp.float32))
    o_ref[0, :, :] = out.astype(o_ref.dtype)


# ----------------------------------------------------------------------------
# Wrapper: layout plumbing (XLA side) + pallas_call
# ----------------------------------------------------------------------------
def block_fft(x, complex_weight):
    """x: (B, C, H, W) float32; complex_weight: (C, H, W//2+1, 2) float32."""
    B, C, H, W = x.shape
    K = W // 2 + 1
    assert complex_weight.shape == (C, H, K, 2)

    TC = _choose_tc(B, C, K)
    nblk = C // TC
    TP = TC * B
    TPW = TP * W
    TPK = TP * K

    Cr, Ci, Fr, Fi, Br, Bi = _dft_matrices(H, W)
    eye = np.eye(TP, dtype=np.float32)
    CBr = jnp.asarray(np.kron(eye, Cr))          # (TP*W, TP*K) block-diag rfft
    CBi = jnp.asarray(np.kron(eye, Ci))
    BBr = jnp.asarray(np.kron(eye, Br))          # (TP*K, TP*W) block-diag irfft
    BBi = jnp.asarray(np.kron(eye, Bi))
    Frj = jnp.asarray(Fr)
    Fij = jnp.asarray(Fi)
    Fsj = jnp.asarray(Fr + Fi)                   # for Gauss 3-mult (forward)
    Fdj = jnp.asarray(Fr - Fi)                   # for Gauss 3-mult (inverse)

    # x: (B, C, H, W) -> (nblk, H, TP*W), lane order within a block = (tc, b, w)
    xt = jnp.transpose(x, (1, 2, 0, 3))                       # (C, H, B, W)
    xt = xt.reshape(nblk, TC, H, B, W)
    xt = jnp.transpose(xt, (0, 2, 1, 3, 4)).reshape(nblk, H, TPW)

    # weight: (C, H, K) -> (nblk, H, TP*K), broadcast over batch, lane order (tc, b, k)
    def fold_weight(w):
        w4 = w.reshape(nblk, TC, H, K)
        w5 = jnp.broadcast_to(w4[:, :, None], (nblk, TC, B, H, K))
        return jnp.transpose(w5, (0, 3, 1, 2, 4)).reshape(nblk, H, TPK)

    wr_t = fold_weight(complex_weight[..., 0].astype(jnp.float32))
    wi_t = fold_weight(complex_weight[..., 1].astype(jnp.float32))

    plane_spec = pl.BlockSpec((1, H, TPW), lambda ci: (ci, 0, 0))
    wspec = pl.BlockSpec((1, H, TPK), lambda ci: (ci, 0, 0))
    const = lambda shape: pl.BlockSpec(shape, lambda ci: (0, 0))   # grid-invariant

    out_t = pl.pallas_call(
        _block_fft_kernel,
        out_shape=jax.ShapeDtypeStruct((nblk, H, TPW), x.dtype),
        grid=(nblk,),
        in_specs=[
            plane_spec,                 # x block         (1, H, TP*W)
            wspec, wspec,               # weight real/imag (1, H, TP*K)
            const((TPW, TPK)),          # CBr
            const((TPW, TPK)),          # CBi
            const((H, H)),              # Fr
            const((H, H)),              # Fi
            const((H, H)),              # Fr + Fi
            const((H, H)),              # Fr - Fi
            const((TPK, TPW)),          # BBr
            const((TPK, TPW)),          # BBi
        ],
        out_specs=plane_spec,
        compiler_params=pltpu.CompilerParams(
            dimension_semantics=("parallel",)),
    )(xt, wr_t, wi_t, CBr, CBi, Frj, Fij, Fsj, Fdj, BBr, BBi)

    # (nblk, H, TP*W) -> (B, C, H, W)
    out = out_t.reshape(nblk, H, TC, B, W)
    out = jnp.transpose(out, (3, 0, 2, 1, 4)).reshape(B, C, H, W)
    return out


# ----------------------------------------------------------------------------
# Reference (numpy) for verification
# ----------------------------------------------------------------------------
def _reference(x, complex_weight):
    xn = np.asarray(x)
    cw = np.asarray(complex_weight)
    B, C, H, W = xn.shape
    Xf = np.fft.rfft2(xn, axes=(2, 3), norm="ortho")
    w = cw[..., 0] + 1j * cw[..., 1]
    Xf = Xf * w[None]
    out = np.fft.irfft2(Xf, s=(H, W), axes=(2, 3), norm="ortho")
    return out.astype(np.float32)


if __name__ == "__main__":
    B, C, H, W = 2, 4, 16, 16
    K = W // 2 + 1

    key = jax.random.PRNGKey(0)
    kx, kw = jax.random.split(key)
    x = jax.random.normal(kx, (B, C, H, W), dtype=jnp.float32)
    # nn.Parameter(torch.randn(dim, h-2, w//2, 2) * 0.02) with h = H + 2, w = 2*K
    complex_weight = jax.random.normal(kw, (C, H, K, 2), dtype=jnp.float32) * 0.02

    out = block_fft(x, complex_weight)
    out = jax.block_until_ready(out)

    ref = _reference(x, complex_weight)
    np.testing.assert_allclose(np.asarray(out), ref, atol=1e-4, rtol=1e-3)

    print("KERNEL_OK")
</pallas_src>

<mosaic_0001>
module attributes {stable_mosaic.version = 11 : i64} {
  func.func @_block_fft_kernel(%arg0: i32, %arg1: memref<1x16x64xf32, #tpu.memory_space<vmem>>, %arg2: memref<1x16x36xf32, #tpu.memory_space<vmem>>, %arg3: memref<1x16x36xf32, #tpu.memory_space<vmem>>, %arg4: memref<64x36xf32, #tpu.memory_space<vmem>>, %arg5: memref<64x36xf32, #tpu.memory_space<vmem>>, %arg6: memref<16x16xf32, #tpu.memory_space<vmem>>, %arg7: memref<16x16xf32, #tpu.memory_space<vmem>>, %arg8: memref<16x16xf32, #tpu.memory_space<vmem>>, %arg9: memref<16x16xf32, #tpu.memory_space<vmem>>, %arg10: memref<36x64xf32, #tpu.memory_space<vmem>>, %arg11: memref<36x64xf32, #tpu.memory_space<vmem>>, %arg12: memref<1x16x64xf32, #tpu.memory_space<vmem>>) attributes {dimension_semantics = [#tpu.dimension_semantics<parallel>], iteration_bounds = array<i64: 2>, scalar_prefetch = 0 : i64, scratch_operands = 0 : i64, tpu.core_type = #tpu.core_type<tc>, window_params = [{transform_indices = @transform_0, window_bounds = array<i64: 1, 16, 64>}, {transform_indices = @transform_1, window_bounds = array<i64: 1, 16, 36>}, {transform_indices = @transform_2, window_bounds = array<i64: 1, 16, 36>}, {pipeline_mode = #tpu.pipeline_mode<synchronous>, transform_indices = @transform_3, window_bounds = array<i64: 64, 36>}, {pipeline_mode = #tpu.pipeline_mode<synchronous>, transform_indices = @transform_4, window_bounds = array<i64: 64, 36>}, {pipeline_mode = #tpu.pipeline_mode<synchronous>, transform_indices = @transform_5, window_bounds = array<i64: 16, 16>}, {pipeline_mode = #tpu.pipeline_mode<synchronous>, transform_indices = @transform_6, window_bounds = array<i64: 16, 16>}, {pipeline_mode = #tpu.pipeline_mode<synchronous>, transform_indices = @transform_7, window_bounds = array<i64: 16, 16>}, {pipeline_mode = #tpu.pipeline_mode<synchronous>, transform_indices = @transform_8, window_bounds = array<i64: 16, 16>}, {pipeline_mode = #tpu.pipeline_mode<synchronous>, transform_indices = @transform_9, window_bounds = array<i64: 36, 64>}, {pipeline_mode = #tpu.pipeline_mode<synchronous>, transform_indices = @transform_10, window_bounds = array<i64: 36, 64>}, {transform_indices = @transform_11, window_bounds = array<i64: 1, 16, 64>}]} {
    %c0 = arith.constant 0 : index
    %c0_0 = arith.constant 0 : index
    %c0_1 = arith.constant 0 : index
    %0 = vector.load %arg1[%c0, %c0_0, %c0_1] : memref<1x16x64xf32, #tpu.memory_space<vmem>>, vector<1x16x64xf32>
    %1 = vector.shape_cast %0 : vector<1x16x64xf32> to vector<16x64xf32>
    %c0_2 = arith.constant 0 : index
    %c0_3 = arith.constant 0 : index
    %2 = vector.load %arg4[%c0_2, %c0_3] : memref<64x36xf32, #tpu.memory_space<vmem>>, vector<64x36xf32>
    %cst = arith.constant dense<0.000000e+00> : vector<16x36xf32>
    %3 = tpu.matmul %1, %2, %cst {dimension_numbers = #tpu.dot_dimension_numbers<[1], [0], [0], [1], [0, 0, 1, 1], [], []>} : vector<16x64xf32>, vector<64x36xf32>, vector<16x36xf32> -> vector<16x36xf32>
    %c0_4 = arith.constant 0 : index
    %c0_5 = arith.constant 0 : index
    %4 = vector.load %arg5[%c0_4, %c0_5] : memref<64x36xf32, #tpu.memory_space<vmem>>, vector<64x36xf32>
    %cst_6 = arith.constant dense<0.000000e+00> : vector<16x36xf32>
    %5 = tpu.matmul %1, %4, %cst_6 {dimension_numbers = #tpu.dot_dimension_numbers<[1], [0], [0], [1], [0, 0, 1, 1], [], []>} : vector<16x64xf32>, vector<64x36xf32>, vector<16x36xf32> -> vector<16x36xf32>
    %c0_7 = arith.constant 0 : index
    %c0_8 = arith.constant 0 : index
    %6 = vector.load %arg6[%c0_7, %c0_8] : memref<16x16xf32, #tpu.memory_space<vmem>>, vector<16x16xf32>
    %cst_9 = arith.constant dense<0.000000e+00> : vector<16x36xf32>
    %7 = tpu.matmul %6, %3, %cst_9 {dimension_numbers = #tpu.dot_dimension_numbers<[1], [0], [0], [1], [0, 0, 1, 1], [], []>} : vector<16x16xf32>, vector<16x36xf32>, vector<16x36xf32> -> vector<16x36xf32>
    %c0_10 = arith.constant 0 : index
    %c0_11 = arith.constant 0 : index
    %8 = vector.load %arg7[%c0_10, %c0_11] : memref<16x16xf32, #tpu.memory_space<vmem>>, vector<16x16xf32>
    %cst_12 = arith.constant dense<0.000000e+00> : vector<16x36xf32>
    %9 = tpu.matmul %8, %5, %cst_12 {dimension_numbers = #tpu.dot_dimension_numbers<[1], [0], [0], [1], [0, 0, 1, 1], [], []>} : vector<16x16xf32>, vector<16x36xf32>, vector<16x36xf32> -> vector<16x36xf32>
    %c0_13 = arith.constant 0 : index
    %c0_14 = arith.constant 0 : index
    %10 = vector.load %arg8[%c0_13, %c0_14] : memref<16x16xf32, #tpu.memory_space<vmem>>, vector<16x16xf32>
    %11 = arith.addf %3, %5 : vector<16x36xf32>
    %cst_15 = arith.constant dense<0.000000e+00> : vector<16x36xf32>
    %12 = tpu.matmul %10, %11, %cst_15 {dimension_numbers = #tpu.dot_dimension_numbers<[1], [0], [0], [1], [0, 0, 1, 1], [], []>} : vector<16x16xf32>, vector<16x36xf32>, vector<16x36xf32> -> vector<16x36xf32>
    %13 = arith.subf %7, %9 : vector<16x36xf32>
    %14 = arith.subf %12, %7 : vector<16x36xf32>
    %15 = arith.subf %14, %9 : vector<16x36xf32>
    %c0_16 = arith.constant 0 : index
    %c0_17 = arith.constant 0 : index
    %c0_18 = arith.constant 0 : index
    %16 = vector.load %arg2[%c0_16, %c0_17, %c0_18] : memref<1x16x36xf32, #tpu.memory_space<vmem>>, vector<1x16x36xf32>
    %17 = vector.shape_cast %16 : vector<1x16x36xf32> to vector<16x36xf32>
    %c0_19 = arith.constant 0 : index
    %c0_20 = arith.constant 0 : index
    %c0_21 = arith.constant 0 : index
    %18 = vector.load %arg3[%c0_19, %c0_20, %c0_21] : memref<1x16x36xf32, #tpu.memory_space<vmem>>, vector<1x16x36xf32>
    %19 = vector.shape_cast %18 : vector<1x16x36xf32> to vector<16x36xf32>
    %20 = arith.mulf %13, %17 : vector<16x36xf32>
    %21 = arith.mulf %15, %19 : vector<16x36xf32>
    %22 = arith.subf %20, %21 : vector<16x36xf32>
    %23 = arith.mulf %13, %19 : vector<16x36xf32>
    %24 = arith.mulf %15, %17 : vector<16x36xf32>
    %25 = arith.addf %23, %24 : vector<16x36xf32>
    %c0_22 = arith.constant 0 : index
    %c0_23 = arith.constant 0 : index
    %26 = vector.load %arg6[%c0_22, %c0_23] : memref<16x16xf32, #tpu.memory_space<vmem>>, vector<16x16xf32>
    %cst_24 = arith.constant dense<0.000000e+00> : vector<16x36xf32>
    %27 = tpu.matmul %26, %22, %cst_24 {dimension_numbers = #tpu.dot_dimension_numbers<[1], [0], [0], [1], [0, 0, 1, 1], [], []>} : vector<16x16xf32>, vector<16x36xf32>, vector<16x36xf32> -> vector<16x36xf32>
    %c0_25 = arith.constant 0 : index
    %c0_26 = arith.constant 0 : index
    %28 = vector.load %arg7[%c0_25, %c0_26] : memref<16x16xf32, #tpu.memory_space<vmem>>, vector<16x16xf32>
    %cst_27 = arith.constant dense<0.000000e+00> : vector<16x36xf32>
    %29 = tpu.matmul %28, %25, %cst_27 {dimension_numbers = #tpu.dot_dimension_numbers<[1], [0], [0], [1], [0, 0, 1, 1], [], []>} : vector<16x16xf32>, vector<16x36xf32>, vector<16x36xf32> -> vector<16x36xf32>
    %c0_28 = arith.constant 0 : index
    %c0_29 = arith.constant 0 : index
    %30 = vector.load %arg9[%c0_28, %c0_29] : memref<16x16xf32, #tpu.memory_space<vmem>>, vector<16x16xf32>
    %31 = arith.addf %22, %25 : vector<16x36xf32>
    %cst_30 = arith.constant dense<0.000000e+00> : vector<16x36xf32>
    %32 = tpu.matmul %30, %31, %cst_30 {dimension_numbers = #tpu.dot_dimension_numbers<[1], [0], [0], [1], [0, 0, 1, 1], [], []>} : vector<16x16xf32>, vector<16x36xf32>, vector<16x36xf32> -> vector<16x36xf32>
    %33 = arith.addf %27, %29 : vector<16x36xf32>
    %34 = arith.subf %32, %27 : vector<16x36xf32>
    %35 = arith.addf %34, %29 : vector<16x36xf32>
    %c0_31 = arith.constant 0 : index
    %c0_32 = arith.constant 0 : index
    %36 = vector.load %arg10[%c0_31, %c0_32] : memref<36x64xf32, #tpu.memory_space<vmem>>, vector<36x64xf32>
    %cst_33 = arith.constant dense<0.000000e+00> : vector<16x64xf32>
    %37 = tpu.matmul %33, %36, %cst_33 {dimension_numbers = #tpu.dot_dimension_numbers<[1], [0], [0], [1], [0, 0, 1, 1], [], []>} : vector<16x36xf32>, vector<36x64xf32>, vector<16x64xf32> -> vector<16x64xf32>
    %c0_34 = arith.constant 0 : index
    %c0_35 = arith.constant 0 : index
    %38 = vector.load %arg11[%c0_34, %c0_35] : memref<36x64xf32, #tpu.memory_space<vmem>>, vector<36x64xf32>
    %cst_36 = arith.constant dense<0.000000e+00> : vector<16x64xf32>
    %39 = tpu.matmul %35, %38, %cst_36 {dimension_numbers = #tpu.dot_dimension_numbers<[1], [0], [0], [1], [0, 0, 1, 1], [], []>} : vector<16x36xf32>, vector<36x64xf32>, vector<16x64xf32> -> vector<16x64xf32>
    %40 = arith.addf %37, %39 : vector<16x64xf32>
    %c0_37 = arith.constant 0 : index
    %c0_38 = arith.constant 0 : index
    %c0_39 = arith.constant 0 : index
    %41 = vector.load %arg12[%c0_37, %c0_38, %c0_39] : memref<1x16x64xf32, #tpu.memory_space<vmem>>, vector<1x16x64xf32>
    %42 = vector.shape_cast %41 : vector<1x16x64xf32> to vector<16x64xf32>
    %43 = vector.shape_cast %40 : vector<16x64xf32> to vector<1x16x64xf32>
    tpu.vector_store %arg12[%c0_37, %c0_38, %c0_39], %43 {strides = array<i32>} : memref<1x16x64xf32, #tpu.memory_space<vmem>>, vector<1x16x64xf32>,
    return
  }
  func.func @transform_0(%arg0: i32) -> (i32, i32, i32) {
    %c0_i32 = arith.constant 0 : i32
    %c0_i32_0 = arith.constant 0 : i32
    %c0_i32_1 = arith.constant 0 : i32
    return %arg0, %c0_i32, %c0_i32_0 : i32, i32, i32
  }
  func.func @transform_1(%arg0: i32) -> (i32, i32, i32) {
    %c0_i32 = arith.constant 0 : i32
    %c0_i32_0 = arith.constant 0 : i32
    %c0_i32_1 = arith.constant 0 : i32
    return %arg0, %c0_i32, %c0_i32_0 : i32, i32, i32
  }
  func.func @transform_2(%arg0: i32) -> (i32, i32, i32) {
    %c0_i32 = arith.constant 0 : i32
    %c0_i32_0 = arith.constant 0 : i32
    %c0_i32_1 = arith.constant 0 : i32
    return %arg0, %c0_i32, %c0_i32_0 : i32, i32, i32
  }
  func.func @transform_3(%arg0: i32) -> (i32, i32) {
    %c0_i32 = arith.constant 0 : i32
    %c0_i32_0 = arith.constant 0 : i32
    %c0_i32_1 = arith.constant 0 : i32
    return %c0_i32, %c0_i32_0 : i32, i32
  }
  func.func @transform_4(%arg0: i32) -> (i32, i32) {
    %c0_i32 = arith.constant 0 : i32
    %c0_i32_0 = arith.constant 0 : i32
    %c0_i32_1 = arith.constant 0 : i32
    return %c0_i32, %c0_i32_0 : i32, i32
  }
  func.func @transform_5(%arg0: i32) -> (i32, i32) {
    %c0_i32 = arith.constant 0 : i32
    %c0_i32_0 = arith.constant 0 : i32
    %c0_i32_1 = arith.constant 0 : i32
    return %c0_i32, %c0_i32_0 : i32, i32
  }
  func.func @transform_6(%arg0: i32) -> (i32, i32) {
    %c0_i32 = arith.constant 0 : i32
    %c0_i32_0 = arith.constant 0 : i32
    %c0_i32_1 = arith.constant 0 : i32
    return %c0_i32, %c0_i32_0 : i32, i32
  }
  func.func @transform_7(%arg0: i32) -> (i32, i32) {
    %c0_i32 = arith.constant 0 : i32
    %c0_i32_0 = arith.constant 0 : i32
    %c0_i32_1 = arith.constant 0 : i32
    return %c0_i32, %c0_i32_0 : i32, i32
  }
  func.func @transform_8(%arg0: i32) -> (i32, i32) {
    %c0_i32 = arith.constant 0 : i32
    %c0_i32_0 = arith.constant 0 : i32
    %c0_i32_1 = arith.constant 0 : i32
    return %c0_i32, %c0_i32_0 : i32, i32
  }
  func.func @transform_9(%arg0: i32) -> (i32, i32) {
    %c0_i32 = arith.constant 0 : i32
    %c0_i32_0 = arith.constant 0 : i32
    %c0_i32_1 = arith.constant 0 : i32
    return %c0_i32, %c0_i32_0 : i32, i32
  }
  func.func @transform_10(%arg0: i32) -> (i32, i32) {
    %c0_i32 = arith.constant 0 : i32
    %c0_i32_0 = arith.constant 0 : i32
    %c0_i32_1 = arith.constant 0 : i32
    return %c0_i32, %c0_i32_0 : i32, i32
  }
  func.func @transform_11(%arg0: i32) -> (i32, i32, i32) {
    %c0_i32 = arith.constant 0 : i32
    %c0_i32_0 = arith.constant 0 : i32
    %c0_i32_1 = arith.constant 0 : i32
    return %arg0, %c0_i32, %c0_i32_0 : i32, i32, i32
  }
}

</mosaic_0001>

<llo_original>
// kernel: tpu_custom_call.1
$region0: #{tpu_custom_call.1}
  #allocation0 [shape = 'u32[]', space=smem, size = 0x4, offset = 0x4, fixed_abs, tag = 'smem constant byte address 0x4 - core index']
  #allocation1 [shape = 'u32[144,128]{1,0:T(1,128)}', space=vmem, size = 0x12000, scoped, tag = 'internal scratch']
  %s0 = inlined_call_operand.vmem [shape: f32[2,16,64], index: 0, kind: input, shape index: {}]
  %s1 = inlined_call_operand.vmem [shape: f32[2,16,36], index: 1, kind: input, shape index: {}]
  %s2 = inlined_call_operand.hbm [shape: f32[2,16,36], index: 2, kind: input, shape index: {}]
  %s3 = inlined_call_operand.vmem [shape: f32[64,36], index: 3, kind: input, shape index: {}]
  %s4 = inlined_call_operand.vmem [shape: f32[64,36], index: 4, kind: input, shape index: {}]
  %s5 = inlined_call_operand.vmem [shape: f32[16,16], index: 5, kind: input, shape index: {}]
  %s6 = inlined_call_operand.vmem [shape: f32[16,16], index: 6, kind: input, shape index: {}]
  %s7 = inlined_call_operand.vmem [shape: f32[16,16], index: 7, kind: input, shape index: {}]
  %s8 = inlined_call_operand.hbm [shape: f32[16,16], index: 8, kind: input, shape index: {}]
  %s9 = inlined_call_operand.vmem [shape: f32[36,64], index: 9, kind: input, shape index: {}]
  %s10 = inlined_call_operand.vmem [shape: f32[36,64], index: 10, kind: input, shape index: {}]
  %s11 = inlined_call_operand.hbm [shape: f32[2,16,64], index: 11, kind: output, shape index: {}]
  %s12 = sld [smem:[#allocation0]]
  $region85: #{tpu_custom_call.1} parent=0
    _
  %s14 = ssub.s32 1, %s12
  %s15 = scalar_select 0, %s14, %s12
  $region1: #{tpu_custom_call.1} parent=0
    #allocation2 [shape = 'u8[16384]{0}', space=vmem, size = 0x4000, scoped, tag = 'input window, operand 2']
    #allocation3 [shape = 's32[2]{0}', space=sflag, size = 0x8, scoped, tag = 'scoped memory for tpu_custom_call.1']
    #allocation4 [shape = 's32[2]{0}', space=sflag, size = 0x8, scoped, tag = 'scoped memory for tpu_custom_call.1']
    #allocation5 [shape = 'u8[8192]{0}', space=vmem, size = 0x2000, scoped, tag = 'input window, operand 8, single buffered']
    #allocation6 [shape = 's32[1]{0}', space=sflag, size = 0x4, scoped, tag = 'scoped memory for tpu_custom_call.1']
    #allocation7 [shape = 'u8[16384]{0}', space=vmem, size = 0x4000, scoped, tag = 'output window, operand 0']
    %16 = vsyncpa [#allocation3], 0
    %s17 = scalar_lea.sflag [#allocation3], 1
    %18 = vsyncpa %s17, 0
    %19 = vsyncpa [#allocation6], 0
    %20 = vsyncpa [#allocation4], 0
    %s21 = scalar_lea.sflag [#allocation4], 1
    %22 = vsyncpa %s21, 0
    loop: start=0, step=1, limit=4
    $region2: #{tpu_custom_call.1} parent=1 // loop_pre_header
      _
    $region3: #{tpu_custom_call.1} parent=1 // loop_header
      %s24 = sphi 0, %s28
      %p25 = scmp.ge.s32.totalorder %s24, 4
      %s34 = sphi 0, %s36
      %s37 = sphi 0, %s34
      %s38 = sphi 0, %s37
      %s54 = sphi 0, %s38
      %s60 = sphi 0, %s62
      %s63 = sphi 0, %s60
      %s64 = sphi 0, %s63
      %s80 = sphi 0, %s64
      %s86 = sphi 0, %s88
      %s89 = sphi 0, %s86
      %s90 = sphi 0, %s89
      %s106 = sphi 0, %s90
      %s110 = sphi 0, %s110
      %s112 = sphi 0, %s110
      %s113 = sphi 0, %s112
      %s127 = sphi 0, %s113
      %s131 = sphi 0, %s131
      %s133 = sphi 0, %s131
      %s134 = sphi 0, %s133
      %s148 = sphi 0, %s134
      %s152 = sphi 0, %s152
      %s154 = sphi 0, %s152
      %s155 = sphi 0, %s154
      %s169 = sphi 0, %s155
      %s173 = sphi 0, %s173
      %s175 = sphi 0, %s173
      %s176 = sphi 0, %s175
      %s190 = sphi 0, %s176
      %s194 = sphi 0, %s194
      %s196 = sphi 0, %s194
      %s197 = sphi 0, %s196
      %s211 = sphi 0, %s197
      %s215 = sphi 0, %s215
      %s217 = sphi 0, %s215
      %s218 = sphi 0, %s217
      %s232 = sphi 0, %s218
      %s236 = sphi 0, %s236
      %s238 = sphi 0, %s236
      %s239 = sphi 0, %s238
      %s253 = sphi 0, %s239
      %s257 = sphi 0, %s257
      %s259 = sphi 0, %s257
      %s260 = sphi 0, %s259
      %s274 = sphi 0, %s260
      %s280 = sphi 0, %s282
      %s283 = sphi 0, %s280
      %s284 = sphi 0, %s283
      %s300 = sphi 0, %s284
    $region4: #{tpu_custom_call.1} parent=1 // loop_header_branch
      %27 = sbr.rel (%p25) target = $region8
    $region5: #{tpu_custom_call.1} parent=1 // loop_body
      %s29 = ssub.s32 %s24, 1
      %s30 = ssub.s32 %s24, 2
      %s31 = sadd.s32 %s24, 1
      %s32 = ssub.s32 %s24, %s31
      %p33 = scmp.eq.s32.totalorder %s32, 0
      %s35 = sadd.s32 %s34, 1
      %s36 = scalar_select %p33, %s34, %s35
      %p39 = pneg %p33
      %p40 = scmp.eq.s32.totalorder %s24, 1
      %p41 = por %p39, %p40
      %p42 = scmp.ne.s32.totalorder %s34, %s37
      %p43 = scmp.eq.s32.totalorder %s24, 0
      %p44 = por %p42, %p43
      %p45 = scmp.ne.s32.totalorder %s34, %s37
      %p46 = scmp.eq.s32.totalorder %s29, 1
      %p47 = por %p45, %p46
      %p48 = scmp.ne.s32.totalorder %s37, %s38
      %p49 = scmp.eq.s32.totalorder %s29, 0
      %p50 = por %p48, %p49
      %p51 = scmp.ne.s32.totalorder %s37, %s38
      %p52 = scmp.eq.s32.totalorder %s30, 1
      %p53 = por %p51, %p52
      %p55 = scmp.ne.s32.totalorder %s38, %s54
      %p56 = scmp.eq.s32.totalorder %s30, 0
      %p57 = por %p55, %p56
      %s58 = ssub.s32 %s24, %s31
      %p59 = scmp.eq.s32.totalorder %s58, 0
      %s61 = sadd.s32 %s60, 1
      %s62 = scalar_select %p59, %s60, %s61
      %p65 = pneg %p59
      %p66 = scmp.eq.s32.totalorder %s24, 1
      %p67 = por %p65, %p66
      %p68 = scmp.ne.s32.totalorder %s60, %s63
      %p69 = scmp.eq.s32.totalorder %s24, 0
      %p70 = por %p68, %p69
      %p71 = scmp.ne.s32.totalorder %s60, %s63
      %p72 = scmp.eq.s32.totalorder %s29, 1
      %p73 = por %p71, %p72
      %p74 = scmp.ne.s32.totalorder %s63, %s64
      %p75 = scmp.eq.s32.totalorder %s29, 0
      %p76 = por %p74, %p75
      %p77 = scmp.ne.s32.totalorder %s63, %s64
      %p78 = scmp.eq.s32.totalorder %s30, 1
      %p79 = por %p77, %p78
      %p81 = scmp.ne.s32.totalorder %s64, %s80
      %p82 = scmp.eq.s32.totalorder %s30, 0
      %p83 = por %p81, %p82
      %s84 = ssub.s32 %s24, %s31
      %p85 = scmp.eq.s32.totalorder %s84, 0
      %s87 = sadd.s32 %s86, 1
      %s88 = scalar_select %p85, %s86, %s87
      %p91 = pneg %p85
      %p92 = scmp.eq.s32.totalorder %s24, 1
      %p93 = por %p91, %p92
      %p94 = scmp.ne.s32.totalorder %s86, %s89
      %p95 = scmp.eq.s32.totalorder %s24, 0
      %p96 = por %p94, %p95
      %p97 = scmp.ne.s32.totalorder %s86, %s89
      %p98 = scmp.eq.s32.totalorder %s29, 1
      %p99 = por %p97, %p98
      %p100 = scmp.ne.s32.totalorder %s89, %s90
      %p101 = scmp.eq.s32.totalorder %s29, 0
      %p102 = por %p100, %p101
      %p103 = scmp.ne.s32.totalorder %s89, %s90
      %p104 = scmp.eq.s32.totalorder %s30, 1
      %p105 = por %p103, %p104
      %p107 = scmp.ne.s32.totalorder %s90, %s106
      %p108 = scmp.eq.s32.totalorder %s30, 0
      %p109 = por %p107, %p108
      %s111 = sadd.s32 %s110, 1
      %p114 = scmp.eq.s32.totalorder %s24, 1
      %p115 = scmp.ne.s32.totalorder %s110, %s112
      %p116 = scmp.eq.s32.totalorder %s24, 0
      %p117 = por %p115, %p116
      %p118 = scmp.ne.s32.totalorder %s110, %s112
      %p119 = scmp.eq.s32.totalorder %s29, 1
      %p120 = por %p118, %p119
      %p121 = scmp.ne.s32.totalorder %s112, %s113
      %p122 = scmp.eq.s32.totalorder %s29, 0
      %p123 = por %p121, %p122
      %p124 = scmp.ne.s32.totalorder %s112, %s113
      %p125 = scmp.eq.s32.totalorder %s30, 1
      %p126 = por %p124, %p125
      %p128 = scmp.ne.s32.totalorder %s113, %s127
      %p129 = scmp.eq.s32.totalorder %s30, 0
      %p130 = por %p128, %p129
      %s132 = sadd.s32 %s131, 1
      %p135 = scmp.eq.s32.totalorder %s24, 1
      %p136 = scmp.ne.s32.totalorder %s131, %s133
      %p137 = scmp.eq.s32.totalorder %s24, 0
      %p138 = por %p136, %p137
      %p139 = scmp.ne.s32.totalorder %s131, %s133
      %p140 = scmp.eq.s32.totalorder %s29, 1
      %p141 = por %p139, %p140
      %p142 = scmp.ne.s32.totalorder %s133, %s134
      %p143 = scmp.eq.s32.totalorder %s29, 0
      %p144 = por %p142, %p143
      %p145 = scmp.ne.s32.totalorder %s133, %s134
      %p146 = scmp.eq.s32.totalorder %s30, 1
      %p147 = por %p145, %p146
      %p149 = scmp.ne.s32.totalorder %s134, %s148
      %p150 = scmp.eq.s32.totalorder %s30, 0
      %p151 = por %p149, %p150
      %s153 = sadd.s32 %s152, 1
      %p156 = scmp.eq.s32.totalorder %s24, 1
      %p157 = scmp.ne.s32.totalorder %s152, %s154
      %p158 = scmp.eq.s32.totalorder %s24, 0
      %p159 = por %p157, %p158
      %p160 = scmp.ne.s32.totalorder %s152, %s154
      %p161 = scmp.eq.s32.totalorder %s29, 1
      %p162 = por %p160, %p161
      %p163 = scmp.ne.s32.totalorder %s154, %s155
      %p164 = scmp.eq.s32.totalorder %s29, 0
      %p165 = por %p163, %p164
      %p166 = scmp.ne.s32.totalorder %s154, %s155
      %p167 = scmp.eq.s32.totalorder %s30, 1
      %p168 = por %p166, %p167
      %p170 = scmp.ne.s32.totalorder %s155, %s169
      %p171 = scmp.eq.s32.totalorder %s30, 0
      %p172 = por %p170, %p171
      %s174 = sadd.s32 %s173, 1
      %p177 = scmp.eq.s32.totalorder %s24, 1
      %p178 = scmp.ne.s32.totalorder %s173, %s175
      %p179 = scmp.eq.s32.totalorder %s24, 0
      %p180 = por %p178, %p179
      %p181 = scmp.ne.s32.totalorder %s173, %s175
      %p182 = scmp.eq.s32.totalorder %s29, 1
      %p183 = por %p181, %p182
      %p184 = scmp.ne.s32.totalorder %s175, %s176
      %p185 = scmp.eq.s32.totalorder %s29, 0
      %p186 = por %p184, %p185
      %p187 = scmp.ne.s32.totalorder %s175, %s176
      %p188 = scmp.eq.s32.totalorder %s30, 1
      %p189 = por %p187, %p188
      %p191 = scmp.ne.s32.totalorder %s176, %s190
      %p192 = scmp.eq.s32.totalorder %s30, 0
      %p193 = por %p191, %p192
      %s195 = sadd.s32 %s194, 1
      %p198 = scmp.eq.s32.totalorder %s24, 1
      %p199 = scmp.ne.s32.totalorder %s194, %s196
      %p200 = scmp.eq.s32.totalorder %s24, 0
      %p201 = por %p199, %p200
      %p202 = scmp.ne.s32.totalorder %s194, %s196
      %p203 = scmp.eq.s32.totalorder %s29, 1
      %p204 = por %p202, %p203
      %p205 = scmp.ne.s32.totalorder %s196, %s197
      %p206 = scmp.eq.s32.totalorder %s29, 0
      %p207 = por %p205, %p206
      %p208 = scmp.ne.s32.totalorder %s196, %s197
      %p209 = scmp.eq.s32.totalorder %s30, 1
      %p210 = por %p208, %p209
      %p212 = scmp.ne.s32.totalorder %s197, %s211
      %p213 = scmp.eq.s32.totalorder %s30, 0
      %p214 = por %p212, %p213
      %s216 = sadd.s32 %s215, 1
      %p219 = scmp.eq.s32.totalorder %s24, 1
      %p220 = scmp.ne.s32.totalorder %s215, %s217
      %p221 = scmp.eq.s32.totalorder %s24, 0
      %p222 = por %p220, %p221
      %p223 = scmp.ne.s32.totalorder %s215, %s217
      %p224 = scmp.eq.s32.totalorder %s29, 1
      %p225 = por %p223, %p224
      %p226 = scmp.ne.s32.totalorder %s217, %s218
      %p227 = scmp.eq.s32.totalorder %s29, 0
      %p228 = por %p226, %p227
      %p229 = scmp.ne.s32.totalorder %s217, %s218
      %p230 = scmp.eq.s32.totalorder %s30, 1
      %p231 = por %p229, %p230
      %p233 = scmp.ne.s32.totalorder %s218, %s232
      %p234 = scmp.eq.s32.totalorder %s30, 0
      %p235 = por %p233, %p234
      %s237 = sadd.s32 %s236, 1
      %p240 = scmp.eq.s32.totalorder %s24, 1
      %p241 = scmp.ne.s32.totalorder %s236, %s238
      %p242 = scmp.eq.s32.totalorder %s24, 0
      %p243 = por %p241, %p242
      %p244 = scmp.ne.s32.totalorder %s236, %s238
      %p245 = scmp.eq.s32.totalorder %s29, 1
      %p246 = por %p244, %p245
      %p247 = scmp.ne.s32.totalorder %s238, %s239
      %p248 = scmp.eq.s32.totalorder %s29, 0
      %p249 = por %p247, %p248
      %p250 = scmp.ne.s32.totalorder %s238, %s239
      %p251 = scmp.eq.s32.totalorder %s30, 1
      %p252 = por %p250, %p251
      %p254 = scmp.ne.s32.totalorder %s239, %s253
      %p255 = scmp.eq.s32.totalorder %s30, 0
      %p256 = por %p254, %p255
      %s258 = sadd.s32 %s257, 1
      %p261 = scmp.eq.s32.totalorder %s24, 1
      %p262 = scmp.ne.s32.totalorder %s257, %s259
      %p263 = scmp.eq.s32.totalorder %s24, 0
      %p264 = por %p262, %p263
      %p265 = scmp.ne.s32.totalorder %s257, %s259
      %p266 = scmp.eq.s32.totalorder %s29, 1
      %p267 = por %p265, %p266
      %p268 = scmp.ne.s32.totalorder %s259, %s260
      %p269 = scmp.eq.s32.totalorder %s29, 0
      %p270 = por %p268, %p269
      %p271 = scmp.ne.s32.totalorder %s259, %s260
      %p272 = scmp.eq.s32.totalorder %s30, 1
      %p273 = por %p271, %p272
      %p275 = scmp.ne.s32.totalorder %s260, %s274
      %p276 = scmp.eq.s32.totalorder %s30, 0
      %p277 = por %p275, %p276
      %s278 = ssub.s32 %s24, %s31
      %p279 = scmp.eq.s32.totalorder %s278, 0
      %s281 = sadd.s32 %s280, 1
      %s282 = scalar_select %p279, %s280, %s281
      %p285 = pneg %p279
      %p286 = scmp.eq.s32.totalorder %s24, 1
      %p287 = por %p285, %p286
      %p288 = scmp.ne.s32.totalorder %s280, %s283
      %p289 = scmp.eq.s32.totalorder %s24, 0
      %p290 = por %p288, %p289
      %p291 = scmp.ne.s32.totalorder %s280, %s283
      %p292 = scmp.eq.s32.totalorder %s29, 1
      %p293 = por %p291, %p292
      %p294 = scmp.ne.s32.totalorder %s283, %s284
      %p295 = scmp.eq.s32.totalorder %s29, 0
      %p296 = por %p294, %p295
      %p297 = scmp.ne.s32.totalorder %s283, %s284
      %p298 = scmp.eq.s32.totalorder %s30, 1
      %p299 = por %p297, %p298
      %p301 = scmp.ne.s32.totalorder %s284, %s300
      %p302 = scmp.eq.s32.totalorder %s30, 0
      %p303 = por %p301, %p302
      %p304 = scmp.le.s32.totalorder 1, %s24
      %p305 = scmp.lt.s32.totalorder %s24, 3
      %p306 = pnand %p304, %p305
      %p307 = pneg %p306
      // Predicated region
      $region9: #{tpu_custom_call.1} parent=5 // pred_check
        _
      $region10: #{tpu_custom_call.1} parent=5 // pred_check_branch
        %309 = sbr.rel (%p306) target = $region12
      $region11: #{tpu_custom_call.1} parent=5 // pred_region
        %s310 = ssub.s32 %s24, 1
        // Predicated region
        $region13: #{tpu_custom_call.1} parent=11 // pred_check
          %p311 = pneg %p123
        $region14: #{tpu_custom_call.1} parent=11 // pred_check_branch
          %313 = sbr.rel (%p311) target = $region16
        $region15: #{tpu_custom_call.1} parent=11 // pred_region
          _
        $region16: #{tpu_custom_call.1} parent=11 // pred_fallthru
          _
        // Predicated region
        $region17: #{tpu_custom_call.1} parent=11 // pred_check
          %p314 = pneg %p144
        $region18: #{tpu_custom_call.1} parent=11 // pred_check_branch
          %316 = sbr.rel (%p314) target = $region20
        $region19: #{tpu_custom_call.1} parent=11 // pred_region
          _
        $region20: #{tpu_custom_call.1} parent=11 // pred_fallthru
          _
        // Predicated region
        $region21: #{tpu_custom_call.1} parent=11 // pred_check
          %p317 = pneg %p165
        $region22: #{tpu_custom_call.1} parent=11 // pred_check_branch
          %319 = sbr.rel (%p317) target = $region24
        $region23: #{tpu_custom_call.1} parent=11 // pred_region
          _
        $region24: #{tpu_custom_call.1} parent=11 // pred_fallthru
          _
        // Predicated region
        $region25: #{tpu_custom_call.1} parent=11 // pred_check
          %p320 = pneg %p186
        $region26: #{tpu_custom_call.1} parent=11 // pred_check_branch
          %322 = sbr.rel (%p320) target = $region28
        $region27: #{tpu_custom_call.1} parent=11 // pred_region
          _
        $region28: #{tpu_custom_call.1} parent=11 // pred_fallthru
          _
        // Predicated region
        $region29: #{tpu_custom_call.1} parent=11 // pred_check
          %p323 = pneg %p207
        $region30: #{tpu_custom_call.1} parent=11 // pred_check_branch
          %325 = sbr.rel (%p323) target = $region32
        $region31: #{tpu_custom_call.1} parent=11 // pred_region
          _
        $region32: #{tpu_custom_call.1} parent=11 // pred_fallthru
          _
        // Predicated region
        $region33: #{tpu_custom_call.1} parent=11 // pred_check
          %p326 = pneg %p228
        $region34: #{tpu_custom_call.1} parent=11 // pred_check_branch
          %328 = sbr.rel (%p326) target = $region36
        $region35: #{tpu_custom_call.1} parent=11 // pred_region
          %s330 = ssub.s32 256, 256
          %331 = vsyncadd [#allocation6], %s330
          %s332 = sshll.u32 [#allocation5], 4
          %s333 = int_to_ptr.vmem [resolvable:$true] %s332
          %338 = dma.hbm_to_vmem [thread:$0]  %s8, 256, %s333, [#allocation6], 128, 128, 8
        $region36: #{tpu_custom_call.1} parent=11 // pred_fallthru
          _
        // Predicated region
        $region37: #{tpu_custom_call.1} parent=11 // pred_check
          %p339 = pneg %p249
        $region38: #{tpu_custom_call.1} parent=11 // pred_check_branch
          %341 = sbr.rel (%p339) target = $region40
        $region39: #{tpu_custom_call.1} parent=11 // pred_region
          _
        $region40: #{tpu_custom_call.1} parent=11 // pred_fallthru
          _
        // Predicated region
        $region41: #{tpu_custom_call.1} parent=11 // pred_check
          %p342 = pneg %p270
        $region42: #{tpu_custom_call.1} parent=11 // pred_check_branch
          %344 = sbr.rel (%p342) target = $region44
        $region43: #{tpu_custom_call.1} parent=11 // pred_region
          _
        $region44: #{tpu_custom_call.1} parent=11 // pred_fallthru
          _
      $region12: #{tpu_custom_call.1} parent=5 // pred_fallthru
        _
      %p345 = scmp.lt.s32.totalorder %s24, 2
      // Predicated region
      $region45: #{tpu_custom_call.1} parent=5 // pred_check
        %p346 = pneg %p345
      $region46: #{tpu_custom_call.1} parent=5 // pred_check_branch
        %348 = sbr.rel (%p346) target = $region48
      $region47: #{tpu_custom_call.1} parent=5 // pred_region
        // Predicated region
        $region49: #{tpu_custom_call.1} parent=47 // pred_check
          %p349 = pneg %p44
        $region50: #{tpu_custom_call.1} parent=47 // pred_check_branch
          %351 = sbr.rel (%p349) target = $region52
        $region51: #{tpu_custom_call.1} parent=47 // pred_region
          %p352 = scmp.lt.s32.totalorder %s24, 1
          %s353 = scalar_select %p352, %s24, 1
          %s354 = smul.addr %s353, 2
          %s355 = smul.addr %s354, 8
          %s356 = scalar_lea.vmem %s0, %s355
        $region52: #{tpu_custom_call.1} parent=47 // pred_fallthru
          _
        // Predicated region
        $region53: #{tpu_custom_call.1} parent=47 // pred_check
          %p357 = pneg %p70
        $region54: #{tpu_custom_call.1} parent=47 // pred_check_branch
          %359 = sbr.rel (%p357) target = $region56
        $region55: #{tpu_custom_call.1} parent=47 // pred_region
          %p360 = scmp.lt.s32.totalorder %s24, 1
          %s361 = scalar_select %p360, %s24, 1
          %s362 = smul.addr %s361, 2
          %s363 = smul.addr %s362, 8
          %s364 = scalar_lea.vmem %s1, %s363
        $region56: #{tpu_custom_call.1} parent=47 // pred_fallthru
          _
        // Predicated region
        $region57: #{tpu_custom_call.1} parent=47 // pred_check
          %p365 = pneg %p96
        $region58: #{tpu_custom_call.1} parent=47 // pred_check_branch
          %367 = sbr.rel (%p365) target = $region60
        $region59: #{tpu_custom_call.1} parent=47 // pred_region
          %s368 = sand.u32 %s86, 1
          %s369 = scalar_lea.sflag [#allocation3], %s368
          %s370 = sand.u32 %s86, 1
          %s371 = smul.addr %s370, 16
          %s372 = scalar_lea.vmem [#allocation2], %s371
          %s374 = ssub.s32 256, 256
          %375 = vsyncadd %s369, %s374
          %s376 = smul.addr %s24, 2
          %s377 = smul.addr %s376, 128
          %s378 = scalar_lea.hbm %s2, %s377
          %s379 = sshll.u32 %s372, 4
          %s380 = int_to_ptr.vmem [resolvable:$true] %s379
          %385 = dma.hbm_to_vmem [thread:$0]  %s378, 256, %s380, %s369, 128, 128, 8
        $region60: #{tpu_custom_call.1} parent=47 // pred_fallthru
          _
      $region48: #{tpu_custom_call.1} parent=5 // pred_fallthru
        _
      %p386 = scmp.le.s32.totalorder 1, %s24
      %p387 = scmp.lt.s32.totalorder %s24, 3
      %p388 = pnand %p386, %p387
      %p389 = pneg %p388
      // Predicated region
      $region61: #{tpu_custom_call.1} parent=5 // pred_check
        _
      $region62: #{tpu_custom_call.1} parent=5 // pred_check_branch
        %391 = sbr.rel (%p388) target = $region64
      $region63: #{tpu_custom_call.1} parent=5 // pred_region
        %s392 = ssub.s32 %s24, 1
        %s393 = sand.u32 %s89, 1
        %s394 = scalar_lea.sflag [#allocation3], %s393
        %s395 = sand.u32 %s89, 1
        %s396 = smul.addr %s395, 16
        %s397 = scalar_lea.vmem [#allocation2], %s396
        // Predicated region
        $region65: #{tpu_custom_call.1} parent=63 // pred_check
          %p398 = pneg %p102
        $region66: #{tpu_custom_call.1} parent=63 // pred_check_branch
          %400 = sbr.rel (%p398) target = $region68
        $region67: #{tpu_custom_call.1} parent=63 // pred_region
          %401 = dma.done %s394, 256
        $region68: #{tpu_custom_call.1} parent=63 // pred_fallthru
          _
        // Predicated region
        $region69: #{tpu_custom_call.1} parent=63 // pred_check
          %p402 = pneg %p228
        $region70: #{tpu_custom_call.1} parent=63 // pred_check_branch
          %404 = sbr.rel (%p402) target = $region72
        $region71: #{tpu_custom_call.1} parent=63 // pred_region
          %405 = dma.done [#allocation6], 256
        $region72: #{tpu_custom_call.1} parent=63 // pred_fallthru
          _
        %p406 = scmp.lt.s32.totalorder %s29, 1
        %s407 = scalar_select %p406, %s29, 1
        %s408 = smul.addr %s407, 2
        %s409 = smul.addr %s408, 8
        %s410 = scalar_lea.vmem %s0, %s409
        %p411 = pneg %p50
        %p412 = pneg %p47
        %p413 = scmp.lt.s32.totalorder %s29, 1
        %s414 = scalar_select %p413, %s29, 1
        %s415 = smul.addr %s414, 2
        %s416 = smul.addr %s415, 8
        %s417 = scalar_lea.vmem %s1, %s416
        %p418 = pneg %p76
        %p419 = pneg %p73
        %s420 = sand.u32 %s89, 1
        %s421 = scalar_lea.sflag [#allocation3], %s420
        %s422 = sand.u32 %s89, 1
        %s423 = smul.addr %s422, 16
        %s424 = scalar_lea.vmem [#allocation2], %s423
        %p425 = pneg %p102
        %p426 = pneg %p99
        %p427 = pneg %p123
        %p428 = pneg %p120
        %p429 = pneg %p144
        %p430 = pneg %p141
        %p431 = pneg %p165
        %p432 = pneg %p162
        %p433 = pneg %p186
        %p434 = pneg %p183
        %p435 = pneg %p207
        %p436 = pneg %p204
        %p437 = pneg %p228
        %p438 = pneg %p225
        %p439 = pneg %p249
        %p440 = pneg %p246
        %p441 = pneg %p270
        %p442 = pneg %p267
        %p443 = pneg %p296
        %p444 = pneg %p293
        %s445 = sand.u32 %s283, 1
        %s446 = scalar_lea.sflag [#allocation4], %s445
        %s447 = sand.u32 %s283, 1
        %s448 = smul.addr %s447, 16
        %s449 = scalar_lea.vmem [#allocation7], %s448
        %p450 = scmp.lt.s32.totalorder %s29, 1
        %s451 = scalar_select %p450, %s29, 1
        %s452 = smul.addr %s451, 2
        %s453 = smul.addr %s452, 8
        %s454 = scalar_lea.vmem %s0, %s453
        %p455 = scmp.lt.s32.totalorder %s29, 1
        %s456 = scalar_select %p455, %s29, 1
        %s457 = smul.addr %s456, 2
        %s458 = smul.addr %s457, 8
        %s459 = scalar_lea.vmem %s1, %s458
        %v460 = vld [vmem:[%s454] sm:$0xff]
        %v461 = vld [vmem:[%s454 + $0x8] sm:$0xff]
        %v462 = vld [vmem:[%s3] sm:$0xff]
        %v463 = vld [vmem:[%s3 + $0x8] sm:$0xff]
        %v464 = vld [vmem:[%s3 + $0x10] sm:$0xff]
        %v465 = vld [vmem:[%s3 + $0x18] sm:$0xff]
        %v466 = vld [vmem:[%s3 + $0x20] sm:$0xff]
        %v467 = vld [vmem:[%s3 + $0x28] sm:$0xff]
        %v468 = vld [vmem:[%s3 + $0x30] sm:$0xff]
        %v469 = vld [vmem:[%s3 + $0x38] sm:$0xff]
        %vm470 = vcmask 523264
        %v472 = vsel %vm470, %v460, 0
        %v475 = vsel %vm470, %v461, 0
        %477 = vmatprep.subr.mxu0 0.0
        %478 = vmatpush1.msra.mxu0 %v462
        %479 = vmatprep.subr.mxu0 0.0
        %480 = vmatpush1.msra.mxu0 %v463
        %481 = vmatprep.subr.mxu0 0.0
        %482 = vmatpush1.msra.mxu0 %v464
        %483 = vmatprep.subr.mxu0 0.0
        %484 = vmatpush1.msra.mxu0 %v465
        %485 = vmatprep.subr.mxu0 0.0
        %486 = vmatpush1.msra.mxu0 %v466
        %487 = vmatprep.subr.mxu0 0.0
        %488 = vmatpush1.msra.mxu0 %v467
        %489 = vmatprep.subr.mxu0 0.0
        %490 = vmatpush1.msra.mxu0 %v468
        %491 = vmatprep.subr.mxu0 0.0
        %492 = vmatpush1.msra.mxu0 %v469
        %493 = vmatprep.subr.mxu0 0.0
        %494 = vmatpush1.msra.mxu0 0.0
        %495 = vmatprep.subr.mxu0 0.0
        %496 = vmatpush1.msra.mxu0 0.0
        %497 = vmatprep.subr.mxu0 0.0
        %498 = vmatpush1.msra.mxu0 0.0
        %499 = vmatprep.subr.mxu0 0.0
        %500 = vmatpush1.msra.mxu0 0.0
        %501 = vmatprep.subr.mxu0 0.0
        %502 = vmatpush1.msra.mxu0 0.0
        %503 = vmatprep.subr.mxu0 0.0
        %504 = vmatpush1.msra.mxu0 0.0
        %505 = vmatprep.subr.mxu0 0.0
        %506 = vmatpush1.msra.mxu0 0.0
        %507 = vmatprep.subr.mxu0 0.0
        %508 = vmatpush1.msra.mxu0 0.0
        %509 = vmatprep.subr.mxu0 0.0
        %510 = vmatpush1.msra.mxu0 0.0
        %511 = vmatprep.subr.mxu0 0.0
        %512 = vmatpush1.msra.mxu0 0.0
        %513 = vmatprep.subr.mxu0 0.0
        %514 = vmatpush1.msra.mxu0 0.0
        %515 = vmatprep.subr.mxu0 0.0
        %516 = vmatpush1.msra.mxu0 0.0
        %517 = vmatprep.subr.mxu0 0.0
        %518 = vmatpush1.msra.mxu0 0.0
        %519 = vmatprep.subr.mxu0 0.0
        %520 = vmatpush1.msra.mxu0 0.0
        %521 = vmatprep.subr.mxu0 0.0
        %522 = vmatpush1.msra.mxu0 0.0
        %523 = vmatprep.subr.mxu0 0.0
        %524 = vmatpush1.msra.mxu0 0.0
        %525 = vmatprep.subr.mxu0 0.0
        %526 = vmatpush1.msra.mxu0 0.0
        %527 = vmatprep.subr.mxu0 0.0
        %528 = vmatpush1.msra.mxu0 0.0
        %529 = vmatprep.subr.mxu0 0.0
        %530 = vmatpush1.msra.mxu0 0.0
        %531 = vmatprep.subr.mxu0 0.0
        %532 = vmatpush1.msra.mxu0 0.0
        %533 = vmatprep.subr.mxu0 0.0
        %534 = vmatpush1.msra.mxu0 0.0
        %535 = vmatprep.subr.mxu0 0.0
        %536 = vmatpush1.msra.mxu0 0.0
        %537 = vmatprep.subr.mxu0 0.0
        %538 = vmatpush1.msra.mxu0 0.0
        %539 = vmatprep.subr.mxu0 0.0
        %540 = vmatpush1.msra.mxu0 0.0
        %541 = vmatprep.mubr.f32.mxu0 0.0
        %542 = vmatmul.mubr.f32.gmra.mrb[0].mxu0 %v472
        %v543 = vpop.f32.mrb[0].mxu0
        %v544 = vadd.f32 0.0, %v543
        %v545 = vpop.f32.mrb[0].mxu0
        %546 = vmatprep.mubr.f32.mxu0 0.0
        %547 = vmatmul.mubr.f32.gmra.mrb[0].mxu0 %v475
        %v548 = vpop.f32.mrb[0].mxu0
        %v549 = vadd.f32 0.0, %v548
        %v550 = vpop.f32.mrb[0].mxu0
        %551 = vdwg.mxu0
        %v552 = vld [vmem:[%s4] sm:$0xff]
        %v553 = vld [vmem:[%s4 + $0x8] sm:$0xff]
        %v554 = vld [vmem:[%s4 + $0x10] sm:$0xff]
        %v555 = vld [vmem:[%s4 + $0x18] sm:$0xff]
        %v556 = vld [vmem:[%s4 + $0x20] sm:$0xff]
        %v557 = vld [vmem:[%s4 + $0x28] sm:$0xff]
        %v558 = vld [vmem:[%s4 + $0x30] sm:$0xff]
        %v559 = vld [vmem:[%s4 + $0x38] sm:$0xff]
        %560 = vmatprep.subr.mxu0 0.0
        %561 = vmatpush1.msra.mxu0 %v552
        %562 = vmatprep.subr.mxu0 0.0
        %563 = vmatpush1.msra.mxu0 %v553
        %564 = vmatprep.subr.mxu0 0.0
        %565 = vmatpush1.msra.mxu0 %v554
        %566 = vmatprep.subr.mxu0 0.0
        %567 = vmatpush1.msra.mxu0 %v555
        %568 = vmatprep.subr.mxu0 0.0
        %569 = vmatpush1.msra.mxu0 %v556
        %570 = vmatprep.subr.mxu0 0.0
        %571 = vmatpush1.msra.mxu0 %v557
        %572 = vmatprep.subr.mxu0 0.0
        %573 = vmatpush1.msra.mxu0 %v558
        %574 = vmatprep.subr.mxu0 0.0
        %575 = vmatpush1.msra.mxu0 %v559
        %576 = vmatprep.subr.mxu0 0.0
        %577 = vmatpush1.msra.mxu0 0.0
        %578 = vmatprep.subr.mxu0 0.0
        %579 = vmatpush1.msra.mxu0 0.0
        %580 = vmatprep.subr.mxu0 0.0
        %581 = vmatpush1.msra.mxu0 0.0
        %582 = vmatprep.subr.mxu0 0.0
        %583 = vmatpush1.msra.mxu0 0.0
        %584 = vmatprep.subr.mxu0 0.0
        %585 = vmatpush1.msra.mxu0 0.0
        %586 = vmatprep.subr.mxu0 0.0
        %587 = vmatpush1.msra.mxu0 0.0
        %588 = vmatprep.subr.mxu0 0.0
        %589 = vmatpush1.msra.mxu0 0.0
        %590 = vmatprep.subr.mxu0 0.0
        %591 = vmatpush1.msra.mxu0 0.0
        %592 = vmatprep.subr.mxu0 0.0
        %593 = vmatpush1.msra.mxu0 0.0
        %594 = vmatprep.subr.mxu0 0.0
        %595 = vmatpush1.msra.mxu0 0.0
        %596 = vmatprep.subr.mxu0 0.0
        %597 = vmatpush1.msra.mxu0 0.0
        %598 = vmatprep.subr.mxu0 0.0
        %599 = vmatpush1.msra.mxu0 0.0
        %600 = vmatprep.subr.mxu0 0.0
        %601 = vmatpush1.msra.mxu0 0.0
        %602 = vmatprep.subr.mxu0 0.0
        %603 = vmatpush1.msra.mxu0 0.0
        %604 = vmatprep.subr.mxu0 0.0
        %605 = vmatpush1.msra.mxu0 0.0
        %606 = vmatprep.subr.mxu0 0.0
        %607 = vmatpush1.msra.mxu0 0.0
        %608 = vmatprep.subr.mxu0 0.0
        %609 = vmatpush1.msra.mxu0 0.0
        %610 = vmatprep.subr.mxu0 0.0
        %611 = vmatpush1.msra.mxu0 0.0
        %612 = vmatprep.subr.mxu0 0.0
        %613 = vmatpush1.msra.mxu0 0.0
        %614 = vmatprep.subr.mxu0 0.0
        %615 = vmatpush1.msra.mxu0 0.0
        %616 = vmatprep.subr.mxu0 0.0
        %617 = vmatpush1.msra.mxu0 0.0
        %618 = vmatprep.subr.mxu0 0.0
        %619 = vmatpush1.msra.mxu0 0.0
        %620 = vmatprep.subr.mxu0 0.0
        %621 = vmatpush1.msra.mxu0 0.0
        %622 = vmatprep.subr.mxu0 0.0
        %623 = vmatpush1.msra.mxu0 0.0
        %624 = vmatprep.mubr.f32.mxu0 0.0
        %625 = vmatmul.mubr.f32.gmra.mrb[0].mxu0 %v472
        %v626 = vpop.f32.mrb[0].mxu0
        %v627 = vadd.f32 0.0, %v626
        %v628 = vpop.f32.mrb[0].mxu0
        %629 = vmatprep.mubr.f32.mxu0 0.0
        %630 = vmatmul.mubr.f32.gmra.mrb[0].mxu0 %v475
        %v631 = vpop.f32.mrb[0].mxu0
        %v632 = vadd.f32 0.0, %v631
        %v633 = vpop.f32.mrb[0].mxu0
        %634 = vdwg.mxu0
        %v635 = vld [vmem:[%s5] sm:$0xff]
        %v636 = vld [vmem:[%s5 + $0x8] sm:$0xff]
        %vm637 = vcmask 130048
        %v639 = vsel %vm637, %v635, 0
        %v642 = vsel %vm637, %v636, 0
        %644 = vmatprep.subr.mxu0 0.0
        %645 = vmatpush1.msra.mxu0 %v544
        %646 = vmatprep.subr.mxu0 0.0
        %647 = vmatpush1.msra.mxu0 %v549
        %648 = vmatprep.subr.mxu0 0.0
        %649 = vmatpush1.msra.mxu0 0.0
        %650 = vmatprep.subr.mxu0 0.0
        %651 = vmatpush1.msra.mxu0 0.0
        %652 = vmatprep.subr.mxu0 0.0
        %653 = vmatpush1.msra.mxu0 0.0
        %654 = vmatprep.subr.mxu0 0.0
        %655 = vmatpush1.msra.mxu0 0.0
        %656 = vmatprep.subr.mxu0 0.0
        %657 = vmatpush1.msra.mxu0 0.0
        %658 = vmatprep.subr.mxu0 0.0
        %659 = vmatpush1.msra.mxu0 0.0
        %660 = vmatprep.subr.mxu0 0.0
        %661 = vmatpush1.msra.mxu0 0.0
        %662 = vmatprep.subr.mxu0 0.0
        %663 = vmatpush1.msra.mxu0 0.0
        %664 = vmatprep.subr.mxu0 0.0
        %665 = vmatpush1.msra.mxu0 0.0
        %666 = vmatprep.subr.mxu0 0.0
        %667 = vmatpush1.msra.mxu0 0.0
        %668 = vmatprep.subr.mxu0 0.0
        %669 = vmatpush1.msra.mxu0 0.0
        %670 = vmatprep.subr.mxu0 0.0
        %671 = vmatpush1.msra.mxu0 0.0
        %672 = vmatprep.subr.mxu0 0.0
        %673 = vmatpush1.msra.mxu0 0.0
        %674 = vmatprep.subr.mxu0 0.0
        %675 = vmatpush1.msra.mxu0 0.0
        %676 = vmatprep.subr.mxu0 0.0
        %677 = vmatpush1.msra.mxu0 0.0
        %678 = vmatprep.subr.mxu0 0.0
        %679 = vmatpush1.msra.mxu0 0.0
        %680 = vmatprep.subr.mxu0 0.0
        %681 = vmatpush1.msra.mxu0 0.0
        %682 = vmatprep.subr.mxu0 0.0
        %683 = vmatpush1.msra.mxu0 0.0
        %684 = vmatprep.subr.mxu0 0.0
        %685 = vmatpush1.msra.mxu0 0.0
        %686 = vmatprep.subr.mxu0 0.0
        %687 = vmatpush1.msra.mxu0 0.0
        %688 = vmatprep.subr.mxu0 0.0
        %689 = vmatpush1.msra.mxu0 0.0
        %690 = vmatprep.subr.mxu0 0.0
        %691 = vmatpush1.msra.mxu0 0.0
        %692 = vmatprep.subr.mxu0 0.0
        %693 = vmatpush1.msra.mxu0 0.0
        %694 = vmatprep.subr.mxu0 0.0
        %695 = vmatpush1.msra.mxu0 0.0
        %696 = vmatprep.subr.mxu0 0.0
        %697 = vmatpush1.msra.mxu0 0.0
        %698 = vmatprep.subr.mxu0 0.0
        %699 = vmatpush1.msra.mxu0 0.0
        %700 = vmatprep.subr.mxu0 0.0
        %701 = vmatpush1.msra.mxu0 0.0
        %702 = vmatprep.subr.mxu0 0.0
        %703 = vmatpush1.msra.mxu0 0.0
        %704 = vmatprep.subr.mxu0 0.0
        %705 = vmatpush1.msra.mxu0 0.0
        %706 = vmatprep.subr.mxu0 0.0
        %707 = vmatpush1.msra.mxu0 0.0
        %708 = vmatprep.mubr.f32.mxu0 0.0
        %709 = vmatmul.mubr.f32.gmra.mrb[0].mxu0 %v639
        %v710 = vpop.f32.mrb[0].mxu0
        %v711 = vadd.f32 0.0, %v710
        %v712 = vpop.f32.mrb[0].mxu0
        %713 = vmatprep.mubr.f32.mxu0 0.0
        %714 = vmatmul.mubr.f32.gmra.mrb[0].mxu0 %v642
        %v715 = vpop.f32.mrb[0].mxu0
        %v716 = vadd.f32 0.0, %v715
        %v717 = vpop.f32.mrb[0].mxu0
        %718 = vdwg.mxu0
        %v719 = vld [vmem:[%s6] sm:$0xff]
        %v720 = vld [vmem:[%s6 + $0x8] sm:$0xff]
        %v722 = vsel %vm637, %v719, 0
        %v725 = vsel %vm637, %v720, 0
        %727 = vmatprep.subr.mxu0 0.0
        %728 = vmatpush1.msra.mxu0 %v627
        %729 = vmatprep.subr.mxu0 0.0
        %730 = vmatpush1.msra.mxu0 %v632
        %731 = vmatprep.subr.mxu0 0.0
        %732 = vmatpush1.msra.mxu0 0.0
        %733 = vmatprep.subr.mxu0 0.0
        %734 = vmatpush1.msra.mxu0 0.0
        %735 = vmatprep.subr.mxu0 0.0
        %736 = vmatpush1.msra.mxu0 0.0
        %737 = vmatprep.subr.mxu0 0.0
        %738 = vmatpush1.msra.mxu0 0.0
        %739 = vmatprep.subr.mxu0 0.0
        %740 = vmatpush1.msra.mxu0 0.0
        %741 = vmatprep.subr.mxu0 0.0
        %742 = vmatpush1.msra.mxu0 0.0
        %743 = vmatprep.subr.mxu0 0.0
        %744 = vmatpush1.msra.mxu0 0.0
        %745 = vmatprep.subr.mxu0 0.0
        %746 = vmatpush1.msra.mxu0 0.0
        %747 = vmatprep.subr.mxu0 0.0
        %748 = vmatpush1.msra.mxu0 0.0
        %749 = vmatprep.subr.mxu0 0.0
        %750 = vmatpush1.msra.mxu0 0.0
        %751 = vmatprep.subr.mxu0 0.0
        %752 = vmatpush1.msra.mxu0 0.0
        %753 = vmatprep.subr.mxu0 0.0
        %754 = vmatpush1.msra.mxu0 0.0
        %755 = vmatprep.subr.mxu0 0.0
        %756 = vmatpush1.msra.mxu0 0.0
        %757 = vmatprep.subr.mxu0 0.0
        %758 = vmatpush1.msra.mxu0 0.0
        %759 = vmatprep.subr.mxu0 0.0
        %760 = vmatpush1.msra.mxu0 0.0
        %761 = vmatprep.subr.mxu0 0.0
        %762 = vmatpush1.msra.mxu0 0.0
        %763 = vmatprep.subr.mxu0 0.0
        %764 = vmatpush1.msra.mxu0 0.0
        %765 = vmatprep.subr.mxu0 0.0
        %766 = vmatpush1.msra.mxu0 0.0
        %767 = vmatprep.subr.mxu0 0.0
        %768 = vmatpush1.msra.mxu0 0.0
        %769 = vmatprep.subr.mxu0 0.0
        %770 = vmatpush1.msra.mxu0 0.0
        %771 = vmatprep.subr.mxu0 0.0
        %772 = vmatpush1.msra.mxu0 0.0
        %773 = vmatprep.subr.mxu0 0.0
        %774 = vmatpush1.msra.mxu0 0.0
        %775 = vmatprep.subr.mxu0 0.0
        %776 = vmatpush1.msra.mxu0 0.0
        %777 = vmatprep.subr.mxu0 0.0
        %778 = vmatpush1.msra.mxu0 0.0
        %779 = vmatprep.subr.mxu0 0.0
        %780 = vmatpush1.msra.mxu0 0.0
        %781 = vmatprep.subr.mxu0 0.0
        %782 = vmatpush1.msra.mxu0 0.0
        %783 = vmatprep.subr.mxu0 0.0
        %784 = vmatpush1.msra.mxu0 0.0
        %785 = vmatprep.subr.mxu0 0.0
        %786 = vmatpush1.msra.mxu0 0.0
        %787 = vmatprep.subr.mxu0 0.0
        %788 = vmatpush1.msra.mxu0 0.0
        %789 = vmatprep.subr.mxu0 0.0
        %790 = vmatpush1.msra.mxu0 0.0
        %791 = vmatprep.mubr.f32.mxu0 0.0
        %792 = vmatmul.mubr.f32.gmra.mrb[0].mxu0 %v722
        %v793 = vpop.f32.mrb[0].mxu0
        %v794 = vadd.f32 0.0, %v793
        %v795 = vpop.f32.mrb[0].mxu0
        %796 = vmatprep.mubr.f32.mxu0 0.0
        %797 = vmatmul.mubr.f32.gmra.mrb[0].mxu0 %v725
        %v798 = vpop.f32.mrb[0].mxu0
        %v799 = vadd.f32 0.0, %v798
        %v800 = vpop.f32.mrb[0].mxu0
        %801 = vdwg.mxu0
        %v802 = vld [vmem:[%s7] sm:$0xff]
        %v803 = vld [vmem:[%s7 + $0x8] sm:$0xff]
        %v804 = vadd.f32 %v544, %v627
        %v805 = vadd.f32 %v549, %v632
        %v807 = vsel %vm637, %v802, 0
        %v810 = vsel %vm637, %v803, 0
        %812 = vmatprep.subr.mxu0 0.0
        %813 = vmatpush1.msra.mxu0 %v804
        %814 = vmatprep.subr.mxu0 0.0
        %815 = vmatpush1.msra.mxu0 %v805
        %816 = vmatprep.subr.mxu0 0.0
        %817 = vmatpush1.msra.mxu0 0.0
        %818 = vmatprep.subr.mxu0 0.0
        %819 = vmatpush1.msra.mxu0 0.0
        %820 = vmatprep.subr.mxu0 0.0
        %821 = vmatpush1.msra.mxu0 0.0
        %822 = vmatprep.subr.mxu0 0.0
        %823 = vmatpush1.msra.mxu0 0.0
        %824 = vmatprep.subr.mxu0 0.0
        %825 = vmatpush1.msra.mxu0 0.0
        %826 = vmatprep.subr.mxu0 0.0
        %827 = vmatpush1.msra.mxu0 0.0
        %828 = vmatprep.subr.mxu0 0.0
        %829 = vmatpush1.msra.mxu0 0.0
        %830 = vmatprep.subr.mxu0 0.0
        %831 = vmatpush1.msra.mxu0 0.0
        %832 = vmatprep.subr.mxu0 0.0
        %833 = vmatpush1.msra.mxu0 0.0
        %834 = vmatprep.subr.mxu0 0.0
        %835 = vmatpush1.msra.mxu0 0.0
        %836 = vmatprep.subr.mxu0 0.0
        %837 = vmatpush1.msra.mxu0 0.0
        %838 = vmatprep.subr.mxu0 0.0
        %839 = vmatpush1.msra.mxu0 0.0
        %840 = vmatprep.subr.mxu0 0.0
        %841 = vmatpush1.msra.mxu0 0.0
        %842 = vmatprep.subr.mxu0 0.0
        %843 = vmatpush1.msra.mxu0 0.0
        %844 = vmatprep.subr.mxu0 0.0
        %845 = vmatpush1.msra.mxu0 0.0
        %846 = vmatprep.subr.mxu0 0.0
        %847 = vmatpush1.msra.mxu0 0.0
        %848 = vmatprep.subr.mxu0 0.0
        %849 = vmatpush1.msra.mxu0 0.0
        %850 = vmatprep.subr.mxu0 0.0
        %851 = vmatpush1.msra.mxu0 0.0
        %852 = vmatprep.subr.mxu0 0.0
        %853 = vmatpush1.msra.mxu0 0.0
        %854 = vmatprep.subr.mxu0 0.0
        %855 = vmatpush1.msra.mxu0 0.0
        %856 = vmatprep.subr.mxu0 0.0
        %857 = vmatpush1.msra.mxu0 0.0
        %858 = vmatprep.subr.mxu0 0.0
        %859 = vmatpush1.msra.mxu0 0.0
        %860 = vmatprep.subr.mxu0 0.0
        %861 = vmatpush1.msra.mxu0 0.0
        %862 = vmatprep.subr.mxu0 0.0
        %863 = vmatpush1.msra.mxu0 0.0
        %864 = vmatprep.subr.mxu0 0.0
        %865 = vmatpush1.msra.mxu0 0.0
        %866 = vmatprep.subr.mxu0 0.0
        %867 = vmatpush1.msra.mxu0 0.0
        %868 = vmatprep.subr.mxu0 0.0
        %869 = vmatpush1.msra.mxu0 0.0
        %870 = vmatprep.subr.mxu0 0.0
        %871 = vmatpush1.msra.mxu0 0.0
        %872 = vmatprep.subr.mxu0 0.0
        %873 = vmatpush1.msra.mxu0 0.0
        %874 = vmatprep.subr.mxu0 0.0
        %875 = vmatpush1.msra.mxu0 0.0
        %876 = vmatprep.mubr.f32.mxu0 0.0
        %877 = vmatmul.mubr.f32.gmra.mrb[0].mxu0 %v807
        %v878 = vpop.f32.mrb[0].mxu0
        %v879 = vadd.f32 0.0, %v878
        %v880 = vpop.f32.mrb[0].mxu0
        %881 = vmatprep.mubr.f32.mxu0 0.0
        %882 = vmatmul.mubr.f32.gmra.mrb[0].mxu0 %v810
        %v883 = vpop.f32.mrb[0].mxu0
        %v884 = vadd.f32 0.0, %v883
        %v885 = vpop.f32.mrb[0].mxu0
        %886 = vdwg.mxu0
        %v887 = vsub.f32 %v711, %v794
        %v888 = vsub.f32 %v716, %v799
        %v889 = vsub.f32 %v879, %v711
        %v890 = vsub.f32 %v884, %v716
        %v891 = vsub.f32 %v889, %v794
        %v892 = vsub.f32 %v890, %v799
        %v893 = vld [vmem:[%s459] sm:$0xff]
        %v894 = vld [vmem:[%s459 + $0x8] sm:$0xff]
        %v895 = vld [vmem:[%s397] sm:$0xff]
        %v896 = vld [vmem:[%s397 + $0x8] sm:$0xff]
        %v897 = vmul.f32 %v887, %v893
        %v898 = vmul.f32 %v888, %v894
        %v899 = vmul.f32 %v891, %v895
        %v900 = vmul.f32 %v892, %v896
        %v901 = vsub.f32 %v897, %v899
        %v902 = vsub.f32 %v898, %v900
        %v903 = vmul.f32 %v887, %v895
        %v904 = vmul.f32 %v888, %v896
        %v905 = vmul.f32 %v891, %v893
        %v906 = vmul.f32 %v892, %v894
        %v907 = vadd.f32 %v903, %v905
        %v908 = vadd.f32 %v904, %v906
        %909 = vmatprep.subr.mxu0 0.0
        %910 = vmatpush1.msra.mxu0 %v901
        %911 = vmatprep.subr.mxu0 0.0
        %912 = vmatpush1.msra.mxu0 %v902
        %913 = vmatprep.subr.mxu0 0.0
        %914 = vmatpush1.msra.mxu0 0.0
        %915 = vmatprep.subr.mxu0 0.0
        %916 = vmatpush1.msra.mxu0 0.0
        %917 = vmatprep.subr.mxu0 0.0
        %918 = vmatpush1.msra.mxu0 0.0
        %919 = vmatprep.subr.mxu0 0.0
        %920 = vmatpush1.msra.mxu0 0.0
        %921 = vmatprep.subr.mxu0 0.0
        %922 = vmatpush1.msra.mxu0 0.0
        %923 = vmatprep.subr.mxu0 0.0
        %924 = vmatpush1.msra.mxu0 0.0
        %925 = vmatprep.subr.mxu0 0.0
        %926 = vmatpush1.msra.mxu0 0.0
        %927 = vmatprep.subr.mxu0 0.0
        %928 = vmatpush1.msra.mxu0 0.0
        %929 = vmatprep.subr.mxu0 0.0
        %930 = vmatpush1.msra.mxu0 0.0
        %931 = vmatprep.subr.mxu0 0.0
        %932 = vmatpush1.msra.mxu0 0.0
        %933 = vmatprep.subr.mxu0 0.0
        %934 = vmatpush1.msra.mxu0 0.0
        %935 = vmatprep.subr.mxu0 0.0
        %936 = vmatpush1.msra.mxu0 0.0
        %937 = vmatprep.subr.mxu0 0.0
        %938 = vmatpush1.msra.mxu0 0.0
        %939 = vmatprep.subr.mxu0 0.0
        %940 = vmatpush1.msra.mxu0 0.0
        %941 = vmatprep.subr.mxu0 0.0
        %942 = vmatpush1.msra.mxu0 0.0
        %943 = vmatprep.subr.mxu0 0.0
        %944 = vmatpush1.msra.mxu0 0.0
        %945 = vmatprep.subr.mxu0 0.0
        %946 = vmatpush1.msra.mxu0 0.0
        %947 = vmatprep.subr.mxu0 0.0
        %948 = vmatpush1.msra.mxu0 0.0
        %949 = vmatprep.subr.mxu0 0.0
        %950 = vmatpush1.msra.mxu0 0.0
        %951 = vmatprep.subr.mxu0 0.0
        %952 = vmatpush1.msra.mxu0 0.0
        %953 = vmatprep.subr.mxu0 0.0
        %954 = vmatpush1.msra.mxu0 0.0
        %955 = vmatprep.subr.mxu0 0.0
        %956 = vmatpush1.msra.mxu0 0.0
        %957 = vmatprep.subr.mxu0 0.0
        %958 = vmatpush1.msra.mxu0 0.0
        %959 = vmatprep.subr.mxu0 0.0
        %960 = vmatpush1.msra.mxu0 0.0
        %961 = vmatprep.subr.mxu0 0.0
        %962 = vmatpush1.msra.mxu0 0.0
        %963 = vmatprep.subr.mxu0 0.0
        %964 = vmatpush1.msra.mxu0 0.0
        %965 = vmatprep.subr.mxu0 0.0
        %966 = vmatpush1.msra.mxu0 0.0
        %967 = vmatprep.subr.mxu0 0.0
        %968 = vmatpush1.msra.mxu0 0.0
        %969 = vmatprep.subr.mxu0 0.0
        %970 = vmatpush1.msra.mxu0 0.0
        %971 = vmatprep.subr.mxu0 0.0
        %972 = vmatpush1.msra.mxu0 0.0
        %973 = vmatprep.mubr.f32.mxu0 0.0
        %974 = vmatmul.mubr.f32.gmra.mrb[0].mxu0 %v639
        %v975 = vpop.f32.mrb[0].mxu0
        %v976 = vadd.f32 0.0, %v975
        %v977 = vpop.f32.mrb[0].mxu0
        %978 = vmatprep.mubr.f32.mxu0 0.0
        %979 = vmatmul.mubr.f32.gmra.mrb[0].mxu0 %v642
        %v980 = vpop.f32.mrb[0].mxu0
        %v981 = vadd.f32 0.0, %v980
        %v982 = vpop.f32.mrb[0].mxu0
        %983 = vdwg.mxu0
        %984 = vmatprep.subr.mxu0 0.0
        %985 = vmatpush1.msra.mxu0 %v907
        %986 = vmatprep.subr.mxu0 0.0
        %987 = vmatpush1.msra.mxu0 %v908
        %988 = vmatprep.subr.mxu0 0.0
        %989 = vmatpush1.msra.mxu0 0.0
        %990 = vmatprep.subr.mxu0 0.0
        %991 = vmatpush1.msra.mxu0 0.0
        %992 = vmatprep.subr.mxu0 0.0
        %993 = vmatpush1.msra.mxu0 0.0
        %994 = vmatprep.subr.mxu0 0.0
        %995 = vmatpush1.msra.mxu0 0.0
        %996 = vmatprep.subr.mxu0 0.0
        %997 = vmatpush1.msra.mxu0 0.0
        %998 = vmatprep.subr.mxu0 0.0
        %999 = vmatpush1.msra.mxu0 0.0
        %1000 = vmatprep.subr.mxu0 0.0
        %1001 = vmatpush1.msra.mxu0 0.0
        %1002 = vmatprep.subr.mxu0 0.0
        %1003 = vmatpush1.msra.mxu0 0.0
        %1004 = vmatprep.subr.mxu0 0.0
        %1005 = vmatpush1.msra.mxu0 0.0
        %1006 = vmatprep.subr.mxu0 0.0
        %1007 = vmatpush1.msra.mxu0 0.0
        %1008 = vmatprep.subr.mxu0 0.0
        %1009 = vmatpush1.msra.mxu0 0.0
        %1010 = vmatprep.subr.mxu0 0.0
        %1011 = vmatpush1.msra.mxu0 0.0
        %1012 = vmatprep.subr.mxu0 0.0
        %1013 = vmatpush1.msra.mxu0 0.0
        %1014 = vmatprep.subr.mxu0 0.0
        %1015 = vmatpush1.msra.mxu0 0.0
        %1016 = vmatprep.subr.mxu0 0.0
        %1017 = vmatpush1.msra.mxu0 0.0
        %1018 = vmatprep.subr.mxu0 0.0
        %1019 = vmatpush1.msra.mxu0 0.0
        %1020 = vmatprep.subr.mxu0 0.0
        %1021 = vmatpush1.msra.mxu0 0.0
        %1022 = vmatprep.subr.mxu0 0.0
        %1023 = vmatpush1.msra.mxu0 0.0
        %1024 = vmatprep.subr.mxu0 0.0
        %1025 = vmatpush1.msra.mxu0 0.0
        %1026 = vmatprep.subr.mxu0 0.0
        %1027 = vmatpush1.msra.mxu0 0.0
        %1028 = vmatprep.subr.mxu0 0.0
        %1029 = vmatpush1.msra.mxu0 0.0
        %1030 = vmatprep.subr.mxu0 0.0
        %1031 = vmatpush1.msra.mxu0 0.0
        %1032 = vmatprep.subr.mxu0 0.0
        %1033 = vmatpush1.msra.mxu0 0.0
        %1034 = vmatprep.subr.mxu0 0.0
        %1035 = vmatpush1.msra.mxu0 0.0
        %1036 = vmatprep.subr.mxu0 0.0
        %1037 = vmatpush1.msra.mxu0 0.0
        %1038 = vmatprep.subr.mxu0 0.0
        %1039 = vmatpush1.msra.mxu0 0.0
        %1040 = vmatprep.subr.mxu0 0.0
        %1041 = vmatpush1.msra.mxu0 0.0
        %1042 = vmatprep.subr.mxu0 0.0
        %1043 = vmatpush1.msra.mxu0 0.0
        %1044 = vmatprep.subr.mxu0 0.0
        %1045 = vmatpush1.msra.mxu0 0.0
        %1046 = vmatprep.subr.mxu0 0.0
        %1047 = vmatpush1.msra.mxu0 0.0
        %1048 = vmatprep.mubr.f32.mxu0 0.0
        %1049 = vmatmul.mubr.f32.gmra.mrb[0].mxu0 %v722
        %v1050 = vpop.f32.mrb[0].mxu0
        %v1051 = vadd.f32 0.0, %v1050
        %v1052 = vpop.f32.mrb[0].mxu0
        %1053 = vmatprep.mubr.f32.mxu0 0.0
        %1054 = vmatmul.mubr.f32.gmra.mrb[0].mxu0 %v725
        %v1055 = vpop.f32.mrb[0].mxu0
        %v1056 = vadd.f32 0.0, %v1055
        %v1057 = vpop.f32.mrb[0].mxu0
        %1058 = vdwg.mxu0
        %v1059 = vld [vmem:[#allocation5] sm:$0xff]
        %v1060 = vld [vmem:[#allocation5 + $0x8] sm:$0xff]
        %v1061 = vadd.f32 %v901, %v907
        %v1062 = vadd.f32 %v902, %v908
        %v1064 = vsel %vm637, %v1059, 0
        %v1067 = vsel %vm637, %v1060, 0
        %1069 = vmatprep.subr.mxu0 0.0
        %1070 = vmatpush1.msra.mxu0 %v1061
        %1071 = vmatprep.subr.mxu0 0.0
        %1072 = vmatpush1.msra.mxu0 %v1062
        %1073 = vmatprep.subr.mxu0 0.0
        %1074 = vmatpush1.msra.mxu0 0.0
        %1075 = vmatprep.subr.mxu0 0.0
        %1076 = vmatpush1.msra.mxu0 0.0
        %1077 = vmatprep.subr.mxu0 0.0
        %1078 = vmatpush1.msra.mxu0 0.0
        %1079 = vmatprep.subr.mxu0 0.0
        %1080 = vmatpush1.msra.mxu0 0.0
        %1081 = vmatprep.subr.mxu0 0.0
        %1082 = vmatpush1.msra.mxu0 0.0
        %1083 = vmatprep.subr.mxu0 0.0
        %1084 = vmatpush1.msra.mxu0 0.0
        %1085 = vmatprep.subr.mxu0 0.0
        %1086 = vmatpush1.msra.mxu0 0.0
        %1087 = vmatprep.subr.mxu0 0.0
        %1088 = vmatpush1.msra.mxu0 0.0
        %1089 = vmatprep.subr.mxu0 0.0
        %1090 = vmatpush1.msra.mxu0 0.0
        %1091 = vmatprep.subr.mxu0 0.0
        %1092 = vmatpush1.msra.mxu0 0.0
        %1093 = vmatprep.subr.mxu0 0.0
        %1094 = vmatpush1.msra.mxu0 0.0
        %1095 = vmatprep.subr.mxu0 0.0
        %1096 = vmatpush1.msra.mxu0 0.0
        %1097 = vmatprep.subr.mxu0 0.0
        %1098 = vmatpush1.msra.mxu0 0.0
        %1099 = vmatprep.subr.mxu0 0.0
        %1100 = vmatpush1.msra.mxu0 0.0
        %1101 = vmatprep.subr.mxu0 0.0
        %1102 = vmatpush1.msra.mxu0 0.0
        %1103 = vmatprep.subr.mxu0 0.0
        %1104 = vmatpush1.msra.mxu0 0.0
        %1105 = vmatprep.subr.mxu0 0.0
        %1106 = vmatpush1.msra.mxu0 0.0
        %1107 = vmatprep.subr.mxu0 0.0
        %1108 = vmatpush1.msra.mxu0 0.0
        %1109 = vmatprep.subr.mxu0 0.0
        %1110 = vmatpush1.msra.mxu0 0.0
        %1111 = vmatprep.subr.mxu0 0.0
        %1112 = vmatpush1.msra.mxu0 0.0
        %1113 = vmatprep.subr.mxu0 0.0
        %1114 = vmatpush1.msra.mxu0 0.0
        %1115 = vmatprep.subr.mxu0 0.0
        %1116 = vmatpush1.msra.mxu0 0.0
        %1117 = vmatprep.subr.mxu0 0.0
        %1118 = vmatpush1.msra.mxu0 0.0
        %1119 = vmatprep.subr.mxu0 0.0
        %1120 = vmatpush1.msra.mxu0 0.0
        %1121 = vmatprep.subr.mxu0 0.0
        %1122 = vmatpush1.msra.mxu0 0.0
        %1123 = vmatprep.subr.mxu0 0.0
        %1124 = vmatpush1.msra.mxu0 0.0
        %1125 = vmatprep.subr.mxu0 0.0
        %1126 = vmatpush1.msra.mxu0 0.0
        %1127 = vmatprep.subr.mxu0 0.0
        %1128 = vmatpush1.msra.mxu0 0.0
        %1129 = vmatprep.subr.mxu0 0.0
        %1130 = vmatpush1.msra.mxu0 0.0
        %1131 = vmatprep.subr.mxu0 0.0
        %1132 = vmatpush1.msra.mxu0 0.0
        %1133 = vmatprep.mubr.f32.mxu0 0.0
        %1134 = vmatmul.mubr.f32.gmra.mrb[0].mxu0 %v1064
        %v1135 = vpop.f32.mrb[0].mxu0
        %v1136 = vadd.f32 0.0, %v1135
        %v1137 = vpop.f32.mrb[0].mxu0
        %1138 = vmatprep.mubr.f32.mxu0 0.0
        %1139 = vmatmul.mubr.f32.gmra.mrb[0].mxu0 %v1067
        %v1140 = vpop.f32.mrb[0].mxu0
        %v1141 = vadd.f32 0.0, %v1140
        %v1142 = vpop.f32.mrb[0].mxu0
        %1143 = vdwg.mxu0
        %v1144 = vadd.f32 %v976, %v1051
        %v1145 = vadd.f32 %v981, %v1056
        %v1146 = vsub.f32 %v1136, %v976
        %v1147 = vsub.f32 %v1141, %v981
        %v1148 = vadd.f32 %v1146, %v1051
        %v1149 = vadd.f32 %v1147, %v1056
        %v1150 = vld [vmem:[%s9] sm:$0xff]
        %v1151 = vld [vmem:[%s9 + $0x8] sm:$0xff]
        %v1152 = vld [vmem:[%s9 + $0x10] sm:$0xff]
        %v1153 = vld [vmem:[%s9 + $0x18] sm:$0xff]
        %v1154 = vld [vmem:[%s9 + $0x20] sm:$0xf]
        %v1155 = vld [vmem:[%s10] sm:$0xff]
        %v1156 = vld [vmem:[%s10 + $0x8] sm:$0xff]
        %v1157 = vld [vmem:[%s10 + $0x10] sm:$0xff]
        %v1158 = vld [vmem:[%s10 + $0x18] sm:$0xff]
        %v1159 = vld [vmem:[%s10 + $0x20] sm:$0xf]
        %vm1160 = vcmask 293888
        %v1162 = vsel %vm1160, %v1148, 0
        %v1165 = vsel %vm1160, %v1149, 0
        %vm1167 = vcmask 1043456
        %v1169 = vsel %vm1167, %v1159, 0
        %1171 = vmatprep.subr.mxu0 0.0
        %1172 = vmatpush1.msra.mxu0 %v1155
        %1173 = vmatprep.subr.mxu0 0.0
        %1174 = vmatpush1.msra.mxu0 %v1156
        %1175 = vmatprep.subr.mxu0 0.0
        %1176 = vmatpush1.msra.mxu0 %v1157
        %1177 = vmatprep.subr.mxu0 0.0
        %1178 = vmatpush1.msra.mxu0 %v1158
        %1179 = vmatprep.subr.mxu0 0.0
        %1180 = vmatpush1.msra.mxu0 %v1169
        %1181 = vmatprep.subr.mxu0 0.0
        %1182 = vmatpush1.msra.mxu0 0.0
        %1183 = vmatprep.subr.mxu0 0.0
        %1184 = vmatpush1.msra.mxu0 0.0
        %1185 = vmatprep.subr.mxu0 0.0
        %1186 = vmatpush1.msra.mxu0 0.0
        %1187 = vmatprep.subr.mxu0 0.0
        %1188 = vmatpush1.msra.mxu0 0.0
        %1189 = vmatprep.subr.mxu0 0.0
        %1190 = vmatpush1.msra.mxu0 0.0
        %1191 = vmatprep.subr.mxu0 0.0
        %1192 = vmatpush1.msra.mxu0 0.0
        %1193 = vmatprep.subr.mxu0 0.0
        %1194 = vmatpush1.msra.mxu0 0.0
        %1195 = vmatprep.subr.mxu0 0.0
        %1196 = vmatpush1.msra.mxu0 0.0
        %1197 = vmatprep.subr.mxu0 0.0
        %1198 = vmatpush1.msra.mxu0 0.0
        %1199 = vmatprep.subr.mxu0 0.0
        %1200 = vmatpush1.msra.mxu0 0.0
        %1201 = vmatprep.subr.mxu0 0.0
        %1202 = vmatpush1.msra.mxu0 0.0
        %1203 = vmatprep.subr.mxu0 0.0
        %1204 = vmatpush1.msra.mxu0 0.0
        %1205 = vmatprep.subr.mxu0 0.0
        %1206 = vmatpush1.msra.mxu0 0.0
        %1207 = vmatprep.subr.mxu0 0.0
        %1208 = vmatpush1.msra.mxu0 0.0
        %1209 = vmatprep.subr.mxu0 0.0
        %1210 = vmatpush1.msra.mxu0 0.0
        %1211 = vmatprep.subr.mxu0 0.0
        %1212 = vmatpush1.msra.mxu0 0.0
        %1213 = vmatprep.subr.mxu0 0.0
        %1214 = vmatpush1.msra.mxu0 0.0
        %1215 = vmatprep.subr.mxu0 0.0
        %1216 = vmatpush1.msra.mxu0 0.0
        %1217 = vmatprep.subr.mxu0 0.0
        %1218 = vmatpush1.msra.mxu0 0.0
        %1219 = vmatprep.subr.mxu0 0.0
        %1220 = vmatpush1.msra.mxu0 0.0
        %1221 = vmatprep.subr.mxu0 0.0
        %1222 = vmatpush1.msra.mxu0 0.0
        %1223 = vmatprep.subr.mxu0 0.0
        %1224 = vmatpush1.msra.mxu0 0.0
        %1225 = vmatprep.subr.mxu0 0.0
        %1226 = vmatpush1.msra.mxu0 0.0
        %1227 = vmatprep.subr.mxu0 0.0
        %1228 = vmatpush1.msra.mxu0 0.0
        %1229 = vmatprep.subr.mxu0 0.0
        %1230 = vmatpush1.msra.mxu0 0.0
        %1231 = vmatprep.subr.mxu0 0.0
        %1232 = vmatpush1.msra.mxu0 0.0
        %1233 = vmatprep.subr.mxu0 0.0
        %1234 = vmatpush1.msra.mxu0 0.0
        %1235 = vmatprep.mubr.f32.mxu0 0.0
        %1236 = vmatmul.mubr.f32.gmra.mrb[0].mxu0 %v1162
        %v1237 = vpop.f32.mrb[0].mxu0
        %v1238 = vadd.f32 0.0, %v1237
        %v1239 = vpop.f32.mrb[0].mxu0
        %1240 = vmatprep.mubr.f32.mxu0 0.0
        %1241 = vmatmul.mubr.f32.gmra.mrb[0].mxu0 %v1165
        %v1242 = vpop.f32.mrb[0].mxu0
        %v1243 = vadd.f32 0.0, %v1242
        %v1244 = vpop.f32.mrb[0].mxu0
        %1245 = vdwg.mxu0
        %v1247 = vsel %vm1160, %v1144, 0
        %v1250 = vsel %vm1160, %v1145, 0
        %v1253 = vsel %vm1167, %v1154, 0
        %1255 = vmatprep.subr.mxu0 0.0
        %1256 = vmatpush1.msra.mxu0 %v1150
        %1257 = vmatprep.subr.mxu0 0.0
        %1258 = vmatpush1.msra.mxu0 %v1151
        %1259 = vmatprep.subr.mxu0 0.0
        %1260 = vmatpush1.msra.mxu0 %v1152
        %1261 = vmatprep.subr.mxu0 0.0
        %1262 = vmatpush1.msra.mxu0 %v1153
        %1263 = vmatprep.subr.mxu0 0.0
        %1264 = vmatpush1.msra.mxu0 %v1253
        %1265 = vmatprep.subr.mxu0 0.0
        %1266 = vmatpush1.msra.mxu0 0.0
        %1267 = vmatprep.subr.mxu0 0.0
        %1268 = vmatpush1.msra.mxu0 0.0
        %1269 = vmatprep.subr.mxu0 0.0
        %1270 = vmatpush1.msra.mxu0 0.0
        %1271 = vmatprep.subr.mxu0 0.0
        %1272 = vmatpush1.msra.mxu0 0.0
        %1273 = vmatprep.subr.mxu0 0.0
        %1274 = vmatpush1.msra.mxu0 0.0
        %1275 = vmatprep.subr.mxu0 0.0
        %1276 = vmatpush1.msra.mxu0 0.0
        %1277 = vmatprep.subr.mxu0 0.0
        %1278 = vmatpush1.msra.mxu0 0.0
        %1279 = vmatprep.subr.mxu0 0.0
        %1280 = vmatpush1.msra.mxu0 0.0
        %1281 = vmatprep.subr.mxu0 0.0
        %1282 = vmatpush1.msra.mxu0 0.0
        %1283 = vmatprep.subr.mxu0 0.0
        %1284 = vmatpush1.msra.mxu0 0.0
        %1285 = vmatprep.subr.mxu0 0.0
        %1286 = vmatpush1.msra.mxu0 0.0
        %1287 = vmatprep.subr.mxu0 0.0
        %1288 = vmatpush1.msra.mxu0 0.0
        %1289 = vmatprep.subr.mxu0 0.0
        %1290 = vmatpush1.msra.mxu0 0.0
        %1291 = vmatprep.subr.mxu0 0.0
        %1292 = vmatpush1.msra.mxu0 0.0
        %1293 = vmatprep.subr.mxu0 0.0
        %1294 = vmatpush1.msra.mxu0 0.0
        %1295 = vmatprep.subr.mxu0 0.0
        %1296 = vmatpush1.msra.mxu0 0.0
        %1297 = vmatprep.subr.mxu0 0.0
        %1298 = vmatpush1.msra.mxu0 0.0
        %1299 = vmatprep.subr.mxu0 0.0
        %1300 = vmatpush1.msra.mxu0 0.0
        %1301 = vmatprep.subr.mxu0 0.0
        %1302 = vmatpush1.msra.mxu0 0.0
        %1303 = vmatprep.subr.mxu0 0.0
        %1304 = vmatpush1.msra.mxu0 0.0
        %1305 = vmatprep.subr.mxu0 0.0
        %1306 = vmatpush1.msra.mxu0 0.0
        %1307 = vmatprep.subr.mxu0 0.0
        %1308 = vmatpush1.msra.mxu0 0.0
        %1309 = vmatprep.subr.mxu0 0.0
        %1310 = vmatpush1.msra.mxu0 0.0
        %1311 = vmatprep.subr.mxu0 0.0
        %1312 = vmatpush1.msra.mxu0 0.0
        %1313 = vmatprep.subr.mxu0 0.0
        %1314 = vmatpush1.msra.mxu0 0.0
        %1315 = vmatprep.subr.mxu0 0.0
        %1316 = vmatpush1.msra.mxu0 0.0
        %1317 = vmatprep.subr.mxu0 0.0
        %1318 = vmatpush1.msra.mxu0 0.0
        %1319 = vmatprep.mubr.f32.mxu0 0.0
        %1320 = vmatmul.mubr.f32.gmra.mrb[0].mxu0 %v1247
        %v1321 = vpop.f32.mrb[0].mxu0
        %v1322 = vadd.f32 %v1238, %v1321
        %v1323 = vpop.f32.mrb[0].mxu0
        %1324 = vmatprep.mubr.f32.mxu0 0.0
        %1325 = vmatmul.mubr.f32.gmra.mrb[0].mxu0 %v1250
        %v1326 = vpop.f32.mrb[0].mxu0
        %v1327 = vadd.f32 %v1243, %v1326
        %v1328 = vpop.f32.mrb[0].mxu0
        %1329 = vdwg.mxu0
        %1330 = vst.msk [vmem:[%s449] sm:$0xff] %vm470, %v1322
        %1331 = vst.msk [vmem:[%s449 + $0x8] sm:$0xff] %vm470, %v1327
        %s1332 = sand.u32 %s283, 1
        %s1333 = scalar_lea.sflag [#allocation4], %s1332
        %s1334 = sand.u32 %s283, 1
        %s1335 = smul.addr %s1334, 16
        %s1336 = scalar_lea.vmem [#allocation7], %s1335
        // Predicated region
        $region73: #{tpu_custom_call.1} parent=63 // pred_check
          %p1337 = pneg %p293
        $region74: #{tpu_custom_call.1} parent=63 // pred_check_branch
          %1339 = sbr.rel (%p1337) target = $region76
        $region75: #{tpu_custom_call.1} parent=63 // pred_region
          %s1341 = ssub.s32 256, 256
          %1342 = vsyncadd %s1333, %s1341
          %s1343 = smul.addr %s29, 2
          %s1344 = smul.addr %s1343, 128
          %s1345 = scalar_lea.hbm %s11, %s1344
          %s1346 = sshll.u32 %s1336, 4
          %s1347 = int_to_ptr.vmem [resolvable:$true] %s1346
          %1352 = dma.vmem_to_hbm [thread:$0]  %s1347, 256, %s1345, %s1333, 128, 128, 8
        $region76: #{tpu_custom_call.1} parent=63 // pred_fallthru
          _
      $region64: #{tpu_custom_call.1} parent=5 // pred_fallthru
        _
      %p1353 = scmp.le.s32.totalorder 2, %s24
      // Predicated region
      $region77: #{tpu_custom_call.1} parent=5 // pred_check
        %p1354 = pneg %p1353
      $region78: #{tpu_custom_call.1} parent=5 // pred_check_branch
        %1356 = sbr.rel (%p1354) target = $region80
      $region79: #{tpu_custom_call.1} parent=5 // pred_region
        %s1357 = ssub.s32 %s24, 2
        // Predicated region
        $region81: #{tpu_custom_call.1} parent=79 // pred_check
          %p1358 = pneg %p299
        $region82: #{tpu_custom_call.1} parent=79 // pred_check_branch
          %1360 = sbr.rel (%p1358) target = $region84
        $region83: #{tpu_custom_call.1} parent=79 // pred_region
          %s1361 = sand.u32 %s284, 1
          %s1362 = scalar_lea.sflag [#allocation4], %s1361
          %s1363 = sand.u32 %s284, 1
          %s1364 = smul.addr %s1363, 16
          %s1365 = scalar_lea.vmem [#allocation7], %s1364
          %1366 = dma.done %s1362, 256
        $region84: #{tpu_custom_call.1} parent=79 // pred_fallthru
          _
      $region80: #{tpu_custom_call.1} parent=5 // pred_fallthru
        _
    $region6: #{tpu_custom_call.1} parent=1 // loop_footer
      %s28 = sadd.s32 1, %s24
    $region7: #{tpu_custom_call.1} parent=1 // loop_footer_branch
      %23 = sbr.rel target = $region3
    $region8: #{tpu_custom_call.1} parent=1 // loop_exit
      _
    %1367 = vsyncpa [#allocation3], 1
    %s1368 = scalar_lea.sflag [#allocation3], 1
    %1369 = vsyncpa %s1368, 1
    %1370 = vsyncpa [#allocation6], 1
    %1371 = vsyncpa [#allocation4], 1
    %s1372 = scalar_lea.sflag [#allocation4], 1
    %1373 = vsyncpa %s1372, 1

</llo_original>
